<compile_context>
chip_gen: v7x
topology: tpu7x:2x2x1
jax: 0.10.0
libtpu: 0.0.40
codegen_flags: <defaults>
</compile_context>

<pallas_src>
import functools

import numpy as np
import jax
import jax.numpy as jnp
from jax.experimental import pallas as pl
from jax.experimental.pallas import tpu as pltpu


# ----------------------------------------------------------------------------
# Fused whole-network kernel: one grid step == one group of `bt` images.
# Row ordering inside every activation slab is (spatial-row major, image minor)
# so all pooling / window slices are static, 8-aligned sublane slices.
# ----------------------------------------------------------------------------
def _lenet_kernel(lhs1_ref, w1_ref, b1_ref, w2_ref, b2_ref,
                  wf1_ref, bf1_ref, wf2_ref, bf2_ref, out_ref):
    f32, bf16 = jnp.float32, jnp.bfloat16
    bt = out_ref.shape[0]                     # images per grid step (static)
    half = 12 * bt                            # even-row block size of conv1 acc

    # ---- conv1: single MXU matmul, M = 24*bt (even rows | odd rows), K=160 --
    acc1 = jnp.dot(lhs1_ref[...], w1_ref[...], preferred_element_type=f32)
    # 2x2 row pool (even/odd output rows are the two sublane halves) + bias/ReLU
    t1 = jnp.maximum(jnp.maximum(acc1[:half], acc1[half:]) + b1_ref[...], 0.0)
    # 2x2 column pool: even/odd output columns live in lane halves [0:128)/[128:256)
    u = jnp.maximum(t1[:, :128], t1[:, 128:])                 # (12*bt, 128) f32
    # u row q*bt + b = pooled conv1 row q of image b; lane 10*owp + ci.

    # ---- conv2: kh folded into K -> single matmul (8*bt, 640) x (640, 256) --
    lhs2 = jnp.concatenate(
        [u[kh * bt:(kh + 8) * bt, :] for kh in range(5)], axis=1).astype(bf16)
    acc2 = jnp.dot(lhs2, w2_ref[...], preferred_element_type=f32)
    t2 = jnp.maximum(acc2 + b2_ref[...], 0.0)
    a2 = jnp.maximum(t2[:, :128], t2[:, 128:])                 # (8*bt, 128) f32
    # a2 row oh2*bt + b; lane 20*owp2 + co (lanes >= 80 are junk, zeroed by wf1).

    # ---- 2x2 row pool + NCHW flatten folded into K -> fc1 -> fc2 ------------
    pooled = [jnp.maximum(a2[(2 * p) * bt:(2 * p + 1) * bt, :],
                          a2[(2 * p + 1) * bt:(2 * p + 2) * bt, :])
              for p in range(4)]
    lhs_fc = jnp.concatenate(pooled, axis=1).astype(bf16)      # (bt, 512)
    h = jnp.dot(lhs_fc, wf1_ref[...], preferred_element_type=f32) + bf1_ref[...]
    out = (jnp.dot(h.astype(bf16), wf2_ref[...], preferred_element_type=f32)
           + bf2_ref[...])                                     # (bt, 128)
    out_ref[...] = out        # single unmasked lane-dense store; :10 sliced outside


# ----------------------------------------------------------------------------
# One-time parameter prep (hoisted off the hot path; plain numpy, runs once).
# Output-lane convention: even output column ow -> lane base in [0,128),
# odd output column -> same base + 128.
# ----------------------------------------------------------------------------
def _conv1_banded(w1):
    """(160, 256) bf16: row 32*kh + w, col 10*(ow//2) + co (+128 if ow odd)."""
    w = np.asarray(w1, np.float32).reshape(10, 5, 5)           # (co, kh, kw)
    band = np.zeros((5, 32, 256), np.float32)
    for kh in range(5):
        for kw in range(5):
            for ow in range(24):
                lane = 10 * (ow // 2) + 128 * (ow % 2)
                band[kh, ow + kw, lane:lane + 10] = w[:, kh, kw]
    return jnp.asarray(band.reshape(160, 256), jnp.bfloat16)


def _conv2_banded(w2):
    """(640, 256) bf16: row 128*kh + 10*iw + ci, col 20*(ow2//2) + co (+128 if odd)."""
    w = np.asarray(w2, np.float32)                             # (co, ci, kh, kw)
    band = np.zeros((5, 128, 256), np.float32)
    for kh in range(5):
        for kw in range(5):
            for ow2 in range(8):
                iw = ow2 + kw
                lane = 20 * (ow2 // 2) + 128 * (ow2 % 2)
                for ci in range(10):
                    band[kh, 10 * iw + ci, lane:lane + 20] = w[:, ci, kh, kw]
    return jnp.asarray(band.reshape(640, 256), jnp.bfloat16)


def _fc1_banded(wf1):
    """(512, 128) bf16: row 128*p + 20*owp + co -> PyTorch flat idx co*16 + p*4 + owp."""
    w = np.asarray(wf1, np.float32)                            # (320, 50)  (in, out)
    band = np.zeros((4, 128, 128), np.float32)
    for p in range(4):
        for owp in range(4):
            for co in range(20):
                band[p, 20 * owp + co, :50] = w[co * 16 + p * 4 + owp, :]
    return jnp.asarray(band.reshape(512, 128), jnp.bfloat16)


def _tile_bias(b, n_groups):
    """(1, 256) f32: bias replicated over every output-column group, both halves."""
    b = np.asarray(b, np.float32)
    c = len(b)
    t = np.zeros((1, 256), np.float32)
    for g in range(n_groups):
        t[0, c * g:c * (g + 1)] = b
        t[0, 128 + c * g:128 + c * (g + 1)] = b
    return jnp.asarray(t)


def prep_params(p):
    wf2 = np.zeros((128, 128), np.float32)
    wf2[:50, :10] = np.asarray(p["wf2"], np.float32)
    bf1 = np.zeros((1, 128), np.float32); bf1[0, :50] = np.asarray(p["bf1"], np.float32)
    bf2 = np.zeros((1, 128), np.float32); bf2[0, :10] = np.asarray(p["bf2"], np.float32)
    return dict(
        w1b=_conv1_banded(p["w1"]),
        b1t=_tile_bias(p["b1"], 12),
        w2b=_conv2_banded(p["w2"]),
        b2t=_tile_bias(p["b2"], 4),
        wf1b=_fc1_banded(p["wf1"]),
        bf1p=jnp.asarray(bf1),
        wf2p=jnp.asarray(wf2, jnp.bfloat16),
        bf2p=jnp.asarray(bf2),
    )


# ----------------------------------------------------------------------------
# Forward wrapper: one fused pallas_call, grid over groups of `bt` images.
# ----------------------------------------------------------------------------
def net_forward(x_nchw, prepped, *, bt=16):
    """x: (B, 1, 28, 28) -> logits (B, 10). bt: images per grid step (mult. of 8)."""
    assert bt % 8 == 0 and bt > 0
    B = x_nchw.shape[0]
    n_groups = (B + bt - 1) // bt
    Bp = n_groups * bt

    # Single bf16 cast of the input, then tiny row-window im2col (kh folded
    # into K; each 28-wide window padded to 32 lanes -> K = 160, ~8 KB/image).
    x = x_nchw.astype(jnp.bfloat16).reshape(B, 28, 28)
    if Bp != B:
        x = jnp.pad(x, ((0, Bp - B), (0, 0), (0, 0)))
    xs = jnp.stack([x[:, kh:kh + 24, :] for kh in range(5)], axis=2)   # (Bp,24,5,28)
    xs = jnp.pad(xs, ((0, 0), (0, 0), (0, 0), (0, 4)))                 # (Bp,24,5,32)
    xs = xs.reshape(n_groups, bt, 12, 2, 160)                          # oh = 2q+parity
    lhs1 = xs.transpose(0, 3, 2, 1, 4).reshape(n_groups * 24 * bt, 160)
    # row (within group) = parity*12*bt + q*bt + b ; lane = 32*kh + w.

    flops = 2 * Bp * (24 * 160 * 256 + 8 * 640 * 256 + 512 * 128 + 128 * 128)
    bytes_accessed = (lhs1.size * 2 + Bp * 128 * 4
                      + (160 + 640) * 256 * 2 + (512 + 128) * 128 * 2 + 4 * 256 * 4)

    full = pl.pallas_call(
        _lenet_kernel,
        out_shape=jax.ShapeDtypeStruct((Bp, 128), jnp.float32),
        grid=(n_groups,),
        in_specs=[
            pl.BlockSpec((24 * bt, 160), lambda g: (g, 0)),    # per-group conv1 LHS
            pl.BlockSpec((160, 256), lambda g: (0, 0)),        # conv1 band (resident)
            pl.BlockSpec((1, 256), lambda g: (0, 0)),          # b1 tiled
            pl.BlockSpec((640, 256), lambda g: (0, 0)),        # conv2 band (resident)
            pl.BlockSpec((1, 256), lambda g: (0, 0)),          # b2 tiled
            pl.BlockSpec((512, 128), lambda g: (0, 0)),        # fc1 band (resident)
            pl.BlockSpec((1, 128), lambda g: (0, 0)),          # bf1 padded
            pl.BlockSpec((128, 128), lambda g: (0, 0)),        # fc2 padded
            pl.BlockSpec((1, 128), lambda g: (0, 0)),          # bf2 padded
        ],
        out_specs=pl.BlockSpec((bt, 128), lambda g: (g, 0)),   # lane-dense store
        compiler_params=pltpu.CompilerParams(
            dimension_semantics=("parallel",)),
        cost_estimate=pl.CostEstimate(flops=flops, transcendentals=0,
                                      bytes_accessed=bytes_accessed),
    )(lhs1, prepped["w1b"], prepped["b1t"], prepped["w2b"], prepped["b2t"],
      prepped["wf1b"], prepped["bf1p"], prepped["wf2p"], prepped["bf2p"])
    return full[:B, :10]                     # un-pad batch + lanes outside Pallas


# ----------------------------------------------------------------------------
# Deterministic synthetic parameters (PyTorch-style uniform init)
# ----------------------------------------------------------------------------
def init_params(key):
    ks = jax.random.split(key, 8)

    def u(k, shape, fan_in):
        bound = 1.0 / float(fan_in) ** 0.5
        return jax.random.uniform(k, shape, jnp.float32, -bound, bound)

    return dict(
        w1=u(ks[0], (10, 1, 5, 5), 1 * 25),   b1=u(ks[1], (10,), 1 * 25),
        w2=u(ks[2], (20, 10, 5, 5), 10 * 25), b2=u(ks[3], (20,), 10 * 25),
        wf1=u(ks[4], (320, 50), 320),         bf1=u(ks[5], (50,), 320),  # (in, out)
        wf2=u(ks[6], (50, 10), 50),           bf2=u(ks[7], (10,), 50),
    )


# ----------------------------------------------------------------------------
# Pure-JAX reference (correctness sanity check)
# ----------------------------------------------------------------------------
def reference_forward(x, p):
    def conv(x, w, b):
        y = jax.lax.conv_general_dilated(
            x, w, (1, 1), "VALID", dimension_numbers=("NCHW", "OIHW", "NCHW"))
        return jax.nn.relu(y + b[None, :, None, None])

    def pool(x):
        return jax.lax.reduce_window(
            x, -jnp.inf, jax.lax.max, (1, 1, 2, 2), (1, 1, 2, 2), "VALID")

    y = pool(conv(x, p["w1"], p["b1"]))
    y = pool(conv(y, p["w2"], p["b2"]))
    y = y.reshape(y.shape[0], -1)
    y = y @ p["wf1"] + p["bf1"]
    y = y @ p["wf2"] + p["bf2"]
    return y


if __name__ == "__main__":
    key = jax.random.PRNGKey(0)
    pkey, xkey = jax.random.split(key)
    params = init_params(pkey)
    prepped = prep_params(params)            # one-time banded-weight prep

    # 28x28 single-channel input is required for the 320-dim flatten to hold.
    B, bt = 32, 8                            # grid = B/bt = 4 (even, v7x friendly)
    x = jax.random.normal(xkey, (B, 1, 28, 28), jnp.float32)

    fwd = jax.jit(functools.partial(net_forward, bt=bt))
    out = fwd(x, prepped)
    jax.block_until_ready(out)
    assert out.shape == (B, 10), out.shape

    ref = reference_forward(x, params)
    err = float(jnp.max(jnp.abs(out - ref)))
    # bf16 MXU operands -> slightly looser tolerance than a pure-f32 path.
    assert jnp.allclose(out, ref, rtol=3e-2, atol=3e-2), err

    print("KERNEL_OK")
</pallas_src>

<mosaic_0001>
module attributes {stable_mosaic.version = 11 : i64} {
  func.func @_lenet_kernel(%arg0: i32, %arg1: memref<192x160xbf16, #tpu.memory_space<vmem>>, %arg2: memref<160x256xbf16, #tpu.memory_space<vmem>>, %arg3: memref<1x256xf32, #tpu.memory_space<vmem>>, %arg4: memref<640x256xbf16, #tpu.memory_space<vmem>>, %arg5: memref<1x256xf32, #tpu.memory_space<vmem>>, %arg6: memref<512x128xbf16, #tpu.memory_space<vmem>>, %arg7: memref<1x128xf32, #tpu.memory_space<vmem>>, %arg8: memref<128x128xbf16, #tpu.memory_space<vmem>>, %arg9: memref<1x128xf32, #tpu.memory_space<vmem>>, %arg10: memref<8x128xf32, #tpu.memory_space<vmem>>) attributes {dimension_semantics = [#tpu.dimension_semantics<parallel>], iteration_bounds = array<i64: 4>, scalar_prefetch = 0 : i64, scratch_operands = 0 : i64, tpu.core_type = #tpu.core_type<tc>, window_params = [{transform_indices = @transform_0, window_bounds = array<i64: 192, 160>}, {pipeline_mode = #tpu.pipeline_mode<synchronous>, transform_indices = @transform_1, window_bounds = array<i64: 160, 256>}, {pipeline_mode = #tpu.pipeline_mode<synchronous>, transform_indices = @transform_2, window_bounds = array<i64: 1, 256>}, {pipeline_mode = #tpu.pipeline_mode<synchronous>, transform_indices = @transform_3, window_bounds = array<i64: 640, 256>}, {pipeline_mode = #tpu.pipeline_mode<synchronous>, transform_indices = @transform_4, window_bounds = array<i64: 1, 256>}, {pipeline_mode = #tpu.pipeline_mode<synchronous>, transform_indices = @transform_5, window_bounds = array<i64: 512, 128>}, {pipeline_mode = #tpu.pipeline_mode<synchronous>, transform_indices = @transform_6, window_bounds = array<i64: 1, 128>}, {pipeline_mode = #tpu.pipeline_mode<synchronous>, transform_indices = @transform_7, window_bounds = array<i64: 128, 128>}, {pipeline_mode = #tpu.pipeline_mode<synchronous>, transform_indices = @transform_8, window_bounds = array<i64: 1, 128>}, {transform_indices = @transform_9, window_bounds = array<i64: 8, 128>}]} {
    %c0 = arith.constant 0 : index
    %c0_0 = arith.constant 0 : index
    %0 = vector.load %arg1[%c0, %c0_0] : memref<192x160xbf16, #tpu.memory_space<vmem>>, vector<192x160xbf16>
    %c0_1 = arith.constant 0 : index
    %c0_2 = arith.constant 0 : index
    %1 = vector.load %arg2[%c0_1, %c0_2] : memref<160x256xbf16, #tpu.memory_space<vmem>>, vector<160x256xbf16>
    %cst = arith.constant dense<0.000000e+00> : vector<192x256xf32>
    %2 = tpu.matmul %0, %1, %cst {dimension_numbers = #tpu.dot_dimension_numbers<[1], [0], [0], [1], [0, 0, 1, 1], [], []>} : vector<192x160xbf16>, vector<160x256xbf16>, vector<192x256xf32> -> vector<192x256xf32>
    %3 = vector.extract_strided_slice %2 {offsets = [0, 0], sizes = [96, 256], strides = [1, 1]} : vector<192x256xf32> to vector<96x256xf32>
    %4 = vector.extract_strided_slice %2 {offsets = [96, 0], sizes = [96, 256], strides = [1, 1]} : vector<192x256xf32> to vector<96x256xf32>
    %5 = arith.maximumf %3, %4 : vector<96x256xf32>
    %c0_3 = arith.constant 0 : index
    %c0_4 = arith.constant 0 : index
    %6 = vector.load %arg3[%c0_3, %c0_4] : memref<1x256xf32, #tpu.memory_space<vmem>>, vector<1x256xf32>
    %7 = vector.broadcast %6 : vector<1x256xf32> to vector<96x256xf32>
    %8 = arith.addf %5, %7 : vector<96x256xf32>
    %cst_5 = arith.constant 0.000000e+00 : f32
    %9 = vector.broadcast %cst_5 : f32 to vector<96x256xf32>
    %10 = arith.maximumf %8, %9 : vector<96x256xf32>
    %11 = vector.extract_strided_slice %10 {offsets = [0, 0], sizes = [96, 128], strides = [1, 1]} : vector<96x256xf32> to vector<96x128xf32>
    %12 = vector.extract_strided_slice %10 {offsets = [0, 128], sizes = [96, 128], strides = [1, 1]} : vector<96x256xf32> to vector<96x128xf32>
    %13 = arith.maximumf %11, %12 : vector<96x128xf32>
    %14 = vector.extract_strided_slice %13 {offsets = [0, 0], sizes = [64, 128], strides = [1, 1]} : vector<96x128xf32> to vector<64x128xf32>
    %15 = vector.extract_strided_slice %13 {offsets = [8, 0], sizes = [64, 128], strides = [1, 1]} : vector<96x128xf32> to vector<64x128xf32>
    %16 = vector.extract_strided_slice %13 {offsets = [16, 0], sizes = [64, 128], strides = [1, 1]} : vector<96x128xf32> to vector<64x128xf32>
    %17 = vector.extract_strided_slice %13 {offsets = [24, 0], sizes = [64, 128], strides = [1, 1]} : vector<96x128xf32> to vector<64x128xf32>
    %18 = vector.extract_strided_slice %13 {offsets = [32, 0], sizes = [64, 128], strides = [1, 1]} : vector<96x128xf32> to vector<64x128xf32>
    %19 = tpu.concatenate %14, %15, %16, %17, %18 in 1 : vector<64x128xf32>, vector<64x128xf32>, vector<64x128xf32>, vector<64x128xf32>, vector<64x128xf32> -> vector<64x640xf32>
    %20 = arith.truncf %19 : vector<64x640xf32> to vector<64x640xbf16>
    %c0_6 = arith.constant 0 : index
    %c0_7 = arith.constant 0 : index
    %21 = vector.load %arg4[%c0_6, %c0_7] : memref<640x256xbf16, #tpu.memory_space<vmem>>, vector<640x256xbf16>
    %cst_8 = arith.constant dense<0.000000e+00> : vector<64x256xf32>
    %22 = tpu.matmul %20, %21, %cst_8 {dimension_numbers = #tpu.dot_dimension_numbers<[1], [0], [0], [1], [0, 0, 1, 1], [], []>} : vector<64x640xbf16>, vector<640x256xbf16>, vector<64x256xf32> -> vector<64x256xf32>
    %c0_9 = arith.constant 0 : index
    %c0_10 = arith.constant 0 : index
    %23 = vector.load %arg5[%c0_9, %c0_10] : memref<1x256xf32, #tpu.memory_space<vmem>>, vector<1x256xf32>
    %24 = vector.broadcast %23 : vector<1x256xf32> to vector<64x256xf32>
    %25 = arith.addf %22, %24 : vector<64x256xf32>
    %cst_11 = arith.constant 0.000000e+00 : f32
    %26 = vector.broadcast %cst_11 : f32 to vector<64x256xf32>
    %27 = arith.maximumf %25, %26 : vector<64x256xf32>
    %28 = vector.extract_strided_slice %27 {offsets = [0, 0], sizes = [64, 128], strides = [1, 1]} : vector<64x256xf32> to vector<64x128xf32>
    %29 = vector.extract_strided_slice %27 {offsets = [0, 128], sizes = [64, 128], strides = [1, 1]} : vector<64x256xf32> to vector<64x128xf32>
    %30 = arith.maximumf %28, %29 : vector<64x128xf32>
    %31 = vector.extract_strided_slice %30 {offsets = [0, 0], sizes = [8, 128], strides = [1, 1]} : vector<64x128xf32> to vector<8x128xf32>
    %32 = vector.extract_strided_slice %30 {offsets = [8, 0], sizes = [8, 128], strides = [1, 1]} : vector<64x128xf32> to vector<8x128xf32>
    %33 = arith.maximumf %31, %32 : vector<8x128xf32>
    %34 = vector.extract_strided_slice %30 {offsets = [16, 0], sizes = [8, 128], strides = [1, 1]} : vector<64x128xf32> to vector<8x128xf32>
    %35 = vector.extract_strided_slice %30 {offsets = [24, 0], sizes = [8, 128], strides = [1, 1]} : vector<64x128xf32> to vector<8x128xf32>
    %36 = arith.maximumf %34, %35 : vector<8x128xf32>
    %37 = vector.extract_strided_slice %30 {offsets = [32, 0], sizes = [8, 128], strides = [1, 1]} : vector<64x128xf32> to vector<8x128xf32>
    %38 = vector.extract_strided_slice %30 {offsets = [40, 0], sizes = [8, 128], strides = [1, 1]} : vector<64x128xf32> to vector<8x128xf32>
    %39 = arith.maximumf %37, %38 : vector<8x128xf32>
    %40 = vector.extract_strided_slice %30 {offsets = [48, 0], sizes = [8, 128], strides = [1, 1]} : vector<64x128xf32> to vector<8x128xf32>
    %41 = vector.extract_strided_slice %30 {offsets = [56, 0], sizes = [8, 128], strides = [1, 1]} : vector<64x128xf32> to vector<8x128xf32>
    %42 = arith.maximumf %40, %41 : vector<8x128xf32>
    %43 = tpu.concatenate %33, %36, %39, %42 in 1 : vector<8x128xf32>, vector<8x128xf32>, vector<8x128xf32>, vector<8x128xf32> -> vector<8x512xf32>
    %44 = arith.truncf %43 : vector<8x512xf32> to vector<8x512xbf16>
    %c0_12 = arith.constant 0 : index
    %c0_13 = arith.constant 0 : index
    %45 = vector.load %arg6[%c0_12, %c0_13] : memref<512x128xbf16, #tpu.memory_space<vmem>>, vector<512x128xbf16>
    %cst_14 = arith.constant dense<0.000000e+00> : vector<8x128xf32>
    %46 = tpu.matmul %44, %45, %cst_14 {dimension_numbers = #tpu.dot_dimension_numbers<[1], [0], [0], [1], [0, 0, 1, 1], [], []>} : vector<8x512xbf16>, vector<512x128xbf16>, vector<8x128xf32> -> vector<8x128xf32>
    %c0_15 = arith.constant 0 : index
    %c0_16 = arith.constant 0 : index
    %47 = vector.load %arg7[%c0_15, %c0_16] : memref<1x128xf32, #tpu.memory_space<vmem>>, vector<1x128xf32>
    %48 = vector.broadcast %47 : vector<1x128xf32> to vector<8x128xf32>
    %49 = arith.addf %46, %48 : vector<8x128xf32>
    %50 = arith.truncf %49 : vector<8x128xf32> to vector<8x128xbf16>
    %c0_17 = arith.constant 0 : index
    %c0_18 = arith.constant 0 : index
    %51 = vector.load %arg8[%c0_17, %c0_18] : memref<128x128xbf16, #tpu.memory_space<vmem>>, vector<128x128xbf16>
    %cst_19 = arith.constant dense<0.000000e+00> : vector<8x128xf32>
    %52 = tpu.matmul %50, %51, %cst_19 {dimension_numbers = #tpu.dot_dimension_numbers<[1], [0], [0], [1], [0, 0, 1, 1], [], []>} : vector<8x128xbf16>, vector<128x128xbf16>, vector<8x128xf32> -> vector<8x128xf32>
    %c0_20 = arith.constant 0 : index
    %c0_21 = arith.constant 0 : index
    %53 = vector.load %arg9[%c0_20, %c0_21] : memref<1x128xf32, #tpu.memory_space<vmem>>, vector<1x128xf32>
    %54 = vector.broadcast %53 : vector<1x128xf32> to vector<8x128xf32>
    %55 = arith.addf %52, %54 : vector<8x128xf32>
    %c0_22 = arith.constant 0 : index
    %c0_23 = arith.constant 0 : index
    %56 = vector.load %arg10[%c0_22, %c0_23] : memref<8x128xf32, #tpu.memory_space<vmem>>, vector<8x128xf32>
    tpu.vector_store %arg10[%c0_22, %c0_23], %55 {strides = array<i32>} : memref<8x128xf32, #tpu.memory_space<vmem>>, vector<8x128xf32>,
    return
  }
  func.func @transform_0(%arg0: i32) -> (i32, i32) {
    %c0_i32 = arith.constant 0 : i32
    %c0_i32_0 = arith.constant 0 : i32
    return %arg0, %c0_i32 : i32, i32
  }
  func.func @transform_1(%arg0: i32) -> (i32, i32) {
    %c0_i32 = arith.constant 0 : i32
    %c0_i32_0 = arith.constant 0 : i32
    %c0_i32_1 = arith.constant 0 : i32
    return %c0_i32, %c0_i32_0 : i32, i32
  }
  func.func @transform_2(%arg0: i32) -> (i32, i32) {
    %c0_i32 = arith.constant 0 : i32
    %c0_i32_0 = arith.constant 0 : i32
    %c0_i32_1 = arith.constant 0 : i32
    return %c0_i32, %c0_i32_0 : i32, i32
  }
  func.func @transform_3(%arg0: i32) -> (i32, i32) {
    %c0_i32 = arith.constant 0 : i32
    %c0_i32_0 = arith.constant 0 : i32
    %c0_i32_1 = arith.constant 0 : i32
    return %c0_i32, %c0_i32_0 : i32, i32
  }
  func.func @transform_4(%arg0: i32) -> (i32, i32) {
    %c0_i32 = arith.constant 0 : i32
    %c0_i32_0 = arith.constant 0 : i32
    %c0_i32_1 = arith.constant 0 : i32
    return %c0_i32, %c0_i32_0 : i32, i32
  }
  func.func @transform_5(%arg0: i32) -> (i32, i32) {
    %c0_i32 = arith.constant 0 : i32
    %c0_i32_0 = arith.constant 0 : i32
    %c0_i32_1 = arith.constant 0 : i32
    return %c0_i32, %c0_i32_0 : i32, i32
  }
  func.func @transform_6(%arg0: i32) -> (i32, i32) {
    %c0_i32 = arith.constant 0 : i32
    %c0_i32_0 = arith.constant 0 : i32
    %c0_i32_1 = arith.constant 0 : i32
    return %c0_i32, %c0_i32_0 : i32, i32
  }
  func.func @transform_7(%arg0: i32) -> (i32, i32) {
    %c0_i32 = arith.constant 0 : i32
    %c0_i32_0 = arith.constant 0 : i32
    %c0_i32_1 = arith.constant 0 : i32
    return %c0_i32, %c0_i32_0 : i32, i32
  }
  func.func @transform_8(%arg0: i32) -> (i32, i32) {
    %c0_i32 = arith.constant 0 : i32
    %c0_i32_0 = arith.constant 0 : i32
    %c0_i32_1 = arith.constant 0 : i32
    return %c0_i32, %c0_i32_0 : i32, i32
  }
  func.func @transform_9(%arg0: i32) -> (i32, i32) {
    %c0_i32 = arith.constant 0 : i32
    %c0_i32_0 = arith.constant 0 : i32
    return %arg0, %c0_i32 : i32, i32
  }
}

</mosaic_0001>

<llo_original>
// kernel: net_forward.1
$region0: #{net_forward.1}
  #allocation0 [shape = 'u32[]', space=smem, size = 0x4, offset = 0x4, fixed_abs, tag = 'smem constant byte address 0x4 - core index']
  #allocation1 [shape = 'u32[144,128]{1,0:T(1,128)}', space=vmem, size = 0x12000, scoped, tag = 'internal scratch']
  %s0 = inlined_call_operand.vmem [shape: bf16[768,160], index: 0, kind: input, shape index: {}]
  %s1 = inlined_call_operand.vmem [shape: bf16[160,256], index: 1, kind: input, shape index: {}]
  %s2 = inlined_call_operand.vmem [shape: f32[1,256], index: 2, kind: input, shape index: {}]
  %s3 = inlined_call_operand.vmem [shape: bf16[640,256], index: 3, kind: input, shape index: {}]
  %s4 = inlined_call_operand.vmem [shape: f32[1,256], index: 4, kind: input, shape index: {}]
  %s5 = inlined_call_operand.vmem [shape: bf16[512,128], index: 5, kind: input, shape index: {}]
  %s6 = inlined_call_operand.vmem [shape: f32[1,128], index: 6, kind: input, shape index: {}]
  %s7 = inlined_call_operand.vmem [shape: bf16[128,128], index: 7, kind: input, shape index: {}]
  %s8 = inlined_call_operand.vmem [shape: f32[1,128], index: 8, kind: input, shape index: {}]
  %s9 = inlined_call_operand.vmem [shape: f32[32,128], index: 9, kind: output, shape index: {}]
  %s10 = sld [smem:[#allocation0]]
  $region69: #{net_forward.1} parent=0
    _
  %s12 = ssub.s32 1, %s10
  %s13 = scalar_select 0, %s12, %s10
  loop: start=0, step=1, limit=6
  $region2: #{net_forward.1} parent=0 // loop_pre_header
    _
  $region3: #{net_forward.1} parent=0 // loop_header
    %s15 = sphi 0, %s19
    %p16 = scmp.ge.s32.totalorder %s15, 6
    %s25 = sphi 0, %s27
    %s28 = sphi 0, %s25
    %s29 = sphi 0, %s28
    %s45 = sphi 0, %s29
    %s49 = sphi 0, %s49
    %s51 = sphi 0, %s49
    %s52 = sphi 0, %s51
    %s66 = sphi 0, %s52
    %s70 = sphi 0, %s70
    %s72 = sphi 0, %s70
    %s73 = sphi 0, %s72
    %s87 = sphi 0, %s73
    %s91 = sphi 0, %s91
    %s93 = sphi 0, %s91
    %s94 = sphi 0, %s93
    %s108 = sphi 0, %s94
    %s112 = sphi 0, %s112
    %s114 = sphi 0, %s112
    %s115 = sphi 0, %s114
    %s129 = sphi 0, %s115
    %s133 = sphi 0, %s133
    %s135 = sphi 0, %s133
    %s136 = sphi 0, %s135
    %s150 = sphi 0, %s136
    %s154 = sphi 0, %s154
    %s156 = sphi 0, %s154
    %s157 = sphi 0, %s156
    %s171 = sphi 0, %s157
    %s175 = sphi 0, %s175
    %s177 = sphi 0, %s175
    %s178 = sphi 0, %s177
    %s192 = sphi 0, %s178
    %s196 = sphi 0, %s196
    %s198 = sphi 0, %s196
    %s199 = sphi 0, %s198
    %s213 = sphi 0, %s199
    %s219 = sphi 0, %s221
    %s222 = sphi 0, %s219
    %s223 = sphi 0, %s222
    %s239 = sphi 0, %s223
  $region4: #{net_forward.1} parent=0 // loop_header_branch
    %18 = sbr.rel (%p16) target = $region8
  $region5: #{net_forward.1} parent=0 // loop_body
    %s20 = ssub.s32 %s15, 1
    %s21 = ssub.s32 %s15, 2
    %s22 = sadd.s32 %s15, 1
    %s23 = ssub.s32 %s15, %s22
    %p24 = scmp.eq.s32.totalorder %s23, 0
    %s26 = sadd.s32 %s25, 1
    %s27 = scalar_select %p24, %s25, %s26
    %p30 = pneg %p24
    %p31 = scmp.eq.s32.totalorder %s15, 3
    %p32 = por %p30, %p31
    %p33 = scmp.ne.s32.totalorder %s25, %s28
    %p34 = scmp.eq.s32.totalorder %s15, 0
    %p35 = por %p33, %p34
    %p36 = scmp.ne.s32.totalorder %s25, %s28
    %p37 = scmp.eq.s32.totalorder %s20, 3
    %p38 = por %p36, %p37
    %p39 = scmp.ne.s32.totalorder %s28, %s29
    %p40 = scmp.eq.s32.totalorder %s20, 0
    %p41 = por %p39, %p40
    %p42 = scmp.ne.s32.totalorder %s28, %s29
    %p43 = scmp.eq.s32.totalorder %s21, 3
    %p44 = por %p42, %p43
    %p46 = scmp.ne.s32.totalorder %s29, %s45
    %p47 = scmp.eq.s32.totalorder %s21, 0
    %p48 = por %p46, %p47
    %s50 = sadd.s32 %s49, 1
    %p53 = scmp.eq.s32.totalorder %s15, 3
    %p54 = scmp.ne.s32.totalorder %s49, %s51
    %p55 = scmp.eq.s32.totalorder %s15, 0
    %p56 = por %p54, %p55
    %p57 = scmp.ne.s32.totalorder %s49, %s51
    %p58 = scmp.eq.s32.totalorder %s20, 3
    %p59 = por %p57, %p58
    %p60 = scmp.ne.s32.totalorder %s51, %s52
    %p61 = scmp.eq.s32.totalorder %s20, 0
    %p62 = por %p60, %p61
    %p63 = scmp.ne.s32.totalorder %s51, %s52
    %p64 = scmp.eq.s32.totalorder %s21, 3
    %p65 = por %p63, %p64
    %p67 = scmp.ne.s32.totalorder %s52, %s66
    %p68 = scmp.eq.s32.totalorder %s21, 0
    %p69 = por %p67, %p68
    %s71 = sadd.s32 %s70, 1
    %p74 = scmp.eq.s32.totalorder %s15, 3
    %p75 = scmp.ne.s32.totalorder %s70, %s72
    %p76 = scmp.eq.s32.totalorder %s15, 0
    %p77 = por %p75, %p76
    %p78 = scmp.ne.s32.totalorder %s70, %s72
    %p79 = scmp.eq.s32.totalorder %s20, 3
    %p80 = por %p78, %p79
    %p81 = scmp.ne.s32.totalorder %s72, %s73
    %p82 = scmp.eq.s32.totalorder %s20, 0
    %p83 = por %p81, %p82
    %p84 = scmp.ne.s32.totalorder %s72, %s73
    %p85 = scmp.eq.s32.totalorder %s21, 3
    %p86 = por %p84, %p85
    %p88 = scmp.ne.s32.totalorder %s73, %s87
    %p89 = scmp.eq.s32.totalorder %s21, 0
    %p90 = por %p88, %p89
    %s92 = sadd.s32 %s91, 1
    %p95 = scmp.eq.s32.totalorder %s15, 3
    %p96 = scmp.ne.s32.totalorder %s91, %s93
    %p97 = scmp.eq.s32.totalorder %s15, 0
    %p98 = por %p96, %p97
    %p99 = scmp.ne.s32.totalorder %s91, %s93
    %p100 = scmp.eq.s32.totalorder %s20, 3
    %p101 = por %p99, %p100
    %p102 = scmp.ne.s32.totalorder %s93, %s94
    %p103 = scmp.eq.s32.totalorder %s20, 0
    %p104 = por %p102, %p103
    %p105 = scmp.ne.s32.totalorder %s93, %s94
    %p106 = scmp.eq.s32.totalorder %s21, 3
    %p107 = por %p105, %p106
    %p109 = scmp.ne.s32.totalorder %s94, %s108
    %p110 = scmp.eq.s32.totalorder %s21, 0
    %p111 = por %p109, %p110
    %s113 = sadd.s32 %s112, 1
    %p116 = scmp.eq.s32.totalorder %s15, 3
    %p117 = scmp.ne.s32.totalorder %s112, %s114
    %p118 = scmp.eq.s32.totalorder %s15, 0
    %p119 = por %p117, %p118
    %p120 = scmp.ne.s32.totalorder %s112, %s114
    %p121 = scmp.eq.s32.totalorder %s20, 3
    %p122 = por %p120, %p121
    %p123 = scmp.ne.s32.totalorder %s114, %s115
    %p124 = scmp.eq.s32.totalorder %s20, 0
    %p125 = por %p123, %p124
    %p126 = scmp.ne.s32.totalorder %s114, %s115
    %p127 = scmp.eq.s32.totalorder %s21, 3
    %p128 = por %p126, %p127
    %p130 = scmp.ne.s32.totalorder %s115, %s129
    %p131 = scmp.eq.s32.totalorder %s21, 0
    %p132 = por %p130, %p131
    %s134 = sadd.s32 %s133, 1
    %p137 = scmp.eq.s32.totalorder %s15, 3
    %p138 = scmp.ne.s32.totalorder %s133, %s135
    %p139 = scmp.eq.s32.totalorder %s15, 0
    %p140 = por %p138, %p139
    %p141 = scmp.ne.s32.totalorder %s133, %s135
    %p142 = scmp.eq.s32.totalorder %s20, 3
    %p143 = por %p141, %p142
    %p144 = scmp.ne.s32.totalorder %s135, %s136
    %p145 = scmp.eq.s32.totalorder %s20, 0
    %p146 = por %p144, %p145
    %p147 = scmp.ne.s32.totalorder %s135, %s136
    %p148 = scmp.eq.s32.totalorder %s21, 3
    %p149 = por %p147, %p148
    %p151 = scmp.ne.s32.totalorder %s136, %s150
    %p152 = scmp.eq.s32.totalorder %s21, 0
    %p153 = por %p151, %p152
    %s155 = sadd.s32 %s154, 1
    %p158 = scmp.eq.s32.totalorder %s15, 3
    %p159 = scmp.ne.s32.totalorder %s154, %s156
    %p160 = scmp.eq.s32.totalorder %s15, 0
    %p161 = por %p159, %p160
    %p162 = scmp.ne.s32.totalorder %s154, %s156
    %p163 = scmp.eq.s32.totalorder %s20, 3
    %p164 = por %p162, %p163
    %p165 = scmp.ne.s32.totalorder %s156, %s157
    %p166 = scmp.eq.s32.totalorder %s20, 0
    %p167 = por %p165, %p166
    %p168 = scmp.ne.s32.totalorder %s156, %s157
    %p169 = scmp.eq.s32.totalorder %s21, 3
    %p170 = por %p168, %p169
    %p172 = scmp.ne.s32.totalorder %s157, %s171
    %p173 = scmp.eq.s32.totalorder %s21, 0
    %p174 = por %p172, %p173
    %s176 = sadd.s32 %s175, 1
    %p179 = scmp.eq.s32.totalorder %s15, 3
    %p180 = scmp.ne.s32.totalorder %s175, %s177
    %p181 = scmp.eq.s32.totalorder %s15, 0
    %p182 = por %p180, %p181
    %p183 = scmp.ne.s32.totalorder %s175, %s177
    %p184 = scmp.eq.s32.totalorder %s20, 3
    %p185 = por %p183, %p184
    %p186 = scmp.ne.s32.totalorder %s177, %s178
    %p187 = scmp.eq.s32.totalorder %s20, 0
    %p188 = por %p186, %p187
    %p189 = scmp.ne.s32.totalorder %s177, %s178
    %p190 = scmp.eq.s32.totalorder %s21, 3
    %p191 = por %p189, %p190
    %p193 = scmp.ne.s32.totalorder %s178, %s192
    %p194 = scmp.eq.s32.totalorder %s21, 0
    %p195 = por %p193, %p194
    %s197 = sadd.s32 %s196, 1
    %p200 = scmp.eq.s32.totalorder %s15, 3
    %p201 = scmp.ne.s32.totalorder %s196, %s198
    %p202 = scmp.eq.s32.totalorder %s15, 0
    %p203 = por %p201, %p202
    %p204 = scmp.ne.s32.totalorder %s196, %s198
    %p205 = scmp.eq.s32.totalorder %s20, 3
    %p206 = por %p204, %p205
    %p207 = scmp.ne.s32.totalorder %s198, %s199
    %p208 = scmp.eq.s32.totalorder %s20, 0
    %p209 = por %p207, %p208
    %p210 = scmp.ne.s32.totalorder %s198, %s199
    %p211 = scmp.eq.s32.totalorder %s21, 3
    %p212 = por %p210, %p211
    %p214 = scmp.ne.s32.totalorder %s199, %s213
    %p215 = scmp.eq.s32.totalorder %s21, 0
    %p216 = por %p214, %p215
    %s217 = ssub.s32 %s15, %s22
    %p218 = scmp.eq.s32.totalorder %s217, 0
    %s220 = sadd.s32 %s219, 1
    %s221 = scalar_select %p218, %s219, %s220
    %p224 = pneg %p218
    %p225 = scmp.eq.s32.totalorder %s15, 3
    %p226 = por %p224, %p225
    %p227 = scmp.ne.s32.totalorder %s219, %s222
    %p228 = scmp.eq.s32.totalorder %s15, 0
    %p229 = por %p227, %p228
    %p230 = scmp.ne.s32.totalorder %s219, %s222
    %p231 = scmp.eq.s32.totalorder %s20, 3
    %p232 = por %p230, %p231
    %p233 = scmp.ne.s32.totalorder %s222, %s223
    %p234 = scmp.eq.s32.totalorder %s20, 0
    %p235 = por %p233, %p234
    %p236 = scmp.ne.s32.totalorder %s222, %s223
    %p237 = scmp.eq.s32.totalorder %s21, 3
    %p238 = por %p236, %p237
    %p240 = scmp.ne.s32.totalorder %s223, %s239
    %p241 = scmp.eq.s32.totalorder %s21, 0
    %p242 = por %p240, %p241
    %p243 = scmp.le.s32.totalorder 1, %s15
    %p244 = scmp.lt.s32.totalorder %s15, 5
    %p245 = pnand %p243, %p244
    %p246 = pneg %p245
    // Predicated region
    $region9: #{net_forward.1} parent=5 // pred_check
      _
    $region10: #{net_forward.1} parent=5 // pred_check_branch
      %248 = sbr.rel (%p245) target = $region12
    $region11: #{net_forward.1} parent=5 // pred_region
      %s249 = ssub.s32 %s15, 1
      // Predicated region
      $region13: #{net_forward.1} parent=11 // pred_check
        %p250 = pneg %p62
      $region14: #{net_forward.1} parent=11 // pred_check_branch
        %252 = sbr.rel (%p250) target = $region16
      $region15: #{net_forward.1} parent=11 // pred_region
        _
      $region16: #{net_forward.1} parent=11 // pred_fallthru
        _
      // Predicated region
      $region17: #{net_forward.1} parent=11 // pred_check
        %p253 = pneg %p83
      $region18: #{net_forward.1} parent=11 // pred_check_branch
        %255 = sbr.rel (%p253) target = $region20
      $region19: #{net_forward.1} parent=11 // pred_region
        _
      $region20: #{net_forward.1} parent=11 // pred_fallthru
        _
      // Predicated region
      $region21: #{net_forward.1} parent=11 // pred_check
        %p256 = pneg %p104
      $region22: #{net_forward.1} parent=11 // pred_check_branch
        %258 = sbr.rel (%p256) target = $region24
      $region23: #{net_forward.1} parent=11 // pred_region
        _
      $region24: #{net_forward.1} parent=11 // pred_fallthru
        _
      // Predicated region
      $region25: #{net_forward.1} parent=11 // pred_check
        %p259 = pneg %p125
      $region26: #{net_forward.1} parent=11 // pred_check_branch
        %261 = sbr.rel (%p259) target = $region28
      $region27: #{net_forward.1} parent=11 // pred_region
        _
      $region28: #{net_forward.1} parent=11 // pred_fallthru
        _
      // Predicated region
      $region29: #{net_forward.1} parent=11 // pred_check
        %p262 = pneg %p146
      $region30: #{net_forward.1} parent=11 // pred_check_branch
        %264 = sbr.rel (%p262) target = $region32
      $region31: #{net_forward.1} parent=11 // pred_region
        _
      $region32: #{net_forward.1} parent=11 // pred_fallthru
        _
      // Predicated region
      $region33: #{net_forward.1} parent=11 // pred_check
        %p265 = pneg %p167
      $region34: #{net_forward.1} parent=11 // pred_check_branch
        %267 = sbr.rel (%p265) target = $region36
      $region35: #{net_forward.1} parent=11 // pred_region
        _
      $region36: #{net_forward.1} parent=11 // pred_fallthru
        _
      // Predicated region
      $region37: #{net_forward.1} parent=11 // pred_check
        %p268 = pneg %p188
      $region38: #{net_forward.1} parent=11 // pred_check_branch
        %270 = sbr.rel (%p268) target = $region40
      $region39: #{net_forward.1} parent=11 // pred_region
        _
      $region40: #{net_forward.1} parent=11 // pred_fallthru
        _
      // Predicated region
      $region41: #{net_forward.1} parent=11 // pred_check
        %p271 = pneg %p209
      $region42: #{net_forward.1} parent=11 // pred_check_branch
        %273 = sbr.rel (%p271) target = $region44
      $region43: #{net_forward.1} parent=11 // pred_region
        _
      $region44: #{net_forward.1} parent=11 // pred_fallthru
        _
    $region12: #{net_forward.1} parent=5 // pred_fallthru
      _
    %p274 = scmp.lt.s32.totalorder %s15, 4
    // Predicated region
    $region45: #{net_forward.1} parent=5 // pred_check
      %p275 = pneg %p274
    $region46: #{net_forward.1} parent=5 // pred_check_branch
      %277 = sbr.rel (%p275) target = $region48
    $region47: #{net_forward.1} parent=5 // pred_region
      // Predicated region
      $region49: #{net_forward.1} parent=47 // pred_check
        %p278 = pneg %p35
      $region50: #{net_forward.1} parent=47 // pred_check_branch
        %280 = sbr.rel (%p278) target = $region52
      $region51: #{net_forward.1} parent=47 // pred_region
        %s281 = smul.u32 24, %s15
        %p282 = scmp.lt.s32.totalorder %s281, 95
        %s283 = scalar_select %p282, %s281, 95
        %s284 = smul.addr %s283, 2
        %s285 = smul.addr %s284, 4
        %s286 = scalar_lea.vmem %s0, %s285
        %s287 = smul.u32 24, %s15
      $region52: #{net_forward.1} parent=47 // pred_fallthru
        _
    $region48: #{net_forward.1} parent=5 // pred_fallthru
      _
    %p288 = scmp.le.s32.totalorder 1, %s15
    %p289 = scmp.lt.s32.totalorder %s15, 5
    %p290 = pnand %p288, %p289
    %p291 = pneg %p290
    // Predicated region
    $region53: #{net_forward.1} parent=5 // pred_check
      _
    $region54: #{net_forward.1} parent=5 // pred_check_branch
      %293 = sbr.rel (%p290) target = $region56
    $region55: #{net_forward.1} parent=5 // pred_region
      %s294 = ssub.s32 %s15, 1
      %s295 = smul.u32 24, %s20
      %p296 = scmp.lt.s32.totalorder %s295, 95
      %s297 = scalar_select %p296, %s295, 95
      %s298 = smul.addr %s297, 2
      %s299 = smul.addr %s298, 4
      %s300 = scalar_lea.vmem %s0, %s299
      %p301 = pneg %p41
      %p302 = pneg %p38
      %p303 = pneg %p62
      %p304 = pneg %p59
      %p305 = pneg %p83
      %p306 = pneg %p80
      %p307 = pneg %p104
      %p308 = pneg %p101
      %p309 = pneg %p125
      %p310 = pneg %p122
      %p311 = pneg %p146
      %p312 = pneg %p143
      %p313 = pneg %p167
      %p314 = pneg %p164
      %p315 = pneg %p188
      %p316 = pneg %p185
      %p317 = pneg %p209
      %p318 = pneg %p206
      %p319 = pneg %p235
      %p320 = pneg %p232
      %p321 = scmp.lt.s32.totalorder %s20, 3
      %s322 = scalar_select %p321, %s20, 3
      %s323 = smul.addr %s322, 8
      %s324 = scalar_lea.vmem %s9, %s323
      %s325 = smul.u32 24, %s20
      %p326 = scmp.lt.s32.totalorder %s325, 95
      %s327 = scalar_select %p326, %s325, 95
      %s328 = smul.addr %s327, 2
      %s329 = smul.addr %s328, 4
      %s330 = scalar_lea.vmem %s0, %s329
      %s331 = smul.u32 24, %s20
      %p332 = scmp.lt.s32.totalorder %s20, 3
      %s333 = scalar_select %p332, %s20, 3
      %s334 = smul.addr %s333, 8
      %s335 = scalar_lea.vmem %s9, %s334
      %v337 = vld [vmem:[%s330] sm:$0xff]
      %v338 = vld [vmem:[%s330 + $0x8] sm:$0xff]
      %v339 = vld [vmem:[%s330 + $0x10] sm:$0xff]
      %v340 = vld [vmem:[%s330 + $0x18] sm:$0xff]
      %v341 = vld [vmem:[%s330 + $0x20] sm:$0xff]
      %v342 = vld [vmem:[%s330 + $0x28] sm:$0xff]
      %v343 = vld [vmem:[%s330 + $0x30] sm:$0xff]
      %v344 = vld [vmem:[%s330 + $0x38] sm:$0xff]
      %v345 = vld [vmem:[%s330 + $0x40] sm:$0xff]
      %v346 = vld [vmem:[%s330 + $0x48] sm:$0xff]
      %v347 = vld [vmem:[%s330 + $0x50] sm:$0xff]
      %v348 = vld [vmem:[%s330 + $0x58] sm:$0xff]
      %v349 = vld [vmem:[%s330 + $0x60] sm:$0xff]
      %v350 = vld [vmem:[%s330 + $0x68] sm:$0xff]
      %v351 = vld [vmem:[%s330 + $0x70] sm:$0xff]
      %v352 = vld [vmem:[%s330 + $0x78] sm:$0xff]
      %v353 = vld [vmem:[%s330 + $0x80] sm:$0xff]
      %v354 = vld [vmem:[%s330 + $0x88] sm:$0xff]
      %v355 = vld [vmem:[%s330 + $0x90] sm:$0xff]
      %v356 = vld [vmem:[%s330 + $0x98] sm:$0xff]
      %v357 = vld [vmem:[%s330 + $0xa0] sm:$0xff]
      %v358 = vld [vmem:[%s330 + $0xa8] sm:$0xff]
      %v359 = vld [vmem:[%s330 + $0xb0] sm:$0xff]
      %v360 = vld [vmem:[%s330 + $0xb8] sm:$0xff]
      %v361 = vld [vmem:[%s1] sm:$0xff]
      %v362 = vld [vmem:[%s1 + $0x8] sm:$0xff]
      %v363 = vld [vmem:[%s1 + $0x10] sm:$0xff]
      %v364 = vld [vmem:[%s1 + $0x18] sm:$0xff]
      %v365 = vld [vmem:[%s1 + $0x20] sm:$0xff]
      %v366 = vld [vmem:[%s1 + $0x28] sm:$0xff]
      %v367 = vld [vmem:[%s1 + $0x30] sm:$0xff]
      %v368 = vld [vmem:[%s1 + $0x38] sm:$0xff]
      %v369 = vld [vmem:[%s1 + $0x40] sm:$0xff]
      %v370 = vld [vmem:[%s1 + $0x48] sm:$0xff]
      %v371 = vld [vmem:[%s1 + $0x50] sm:$0xff]
      %v372 = vld [vmem:[%s1 + $0x58] sm:$0xff]
      %v373 = vld [vmem:[%s1 + $0x60] sm:$0xff]
      %v374 = vld [vmem:[%s1 + $0x68] sm:$0xff]
      %v375 = vld [vmem:[%s1 + $0x70] sm:$0xff]
      %v376 = vld [vmem:[%s1 + $0x78] sm:$0xff]
      %v377 = vld [vmem:[%s1 + $0x80] sm:$0xff]
      %v378 = vld [vmem:[%s1 + $0x88] sm:$0xff]
      %v379 = vld [vmem:[%s1 + $0x90] sm:$0xff]
      %v380 = vld [vmem:[%s1 + $0x98] sm:$0xff]
      %v405 = vunpack.c.l.b16 %v337
      %v406 = vunpack.c.h.b16 %v337
      %v407 = vunpack.c.l.b16 %v338
      %v408 = vunpack.c.h.b16 %v338
      %v409 = vunpack.c.l.b16 %v339
      %v410 = vunpack.c.h.b16 %v339
      %v411 = vunpack.c.l.b16 %v340
      %v412 = vunpack.c.h.b16 %v340
      %v413 = vunpack.c.l.b16 %v341
      %v414 = vunpack.c.h.b16 %v341
      %v415 = vunpack.c.l.b16 %v342
      %v416 = vunpack.c.h.b16 %v342
      %v417 = vunpack.c.l.b16 %v343
      %v418 = vunpack.c.h.b16 %v343
      %v419 = vunpack.c.l.b16 %v344
      %v420 = vunpack.c.h.b16 %v344
      %v421 = vunpack.c.l.b16 %v345
      %v422 = vunpack.c.h.b16 %v345
      %v423 = vunpack.c.l.b16 %v346
      %v424 = vunpack.c.h.b16 %v346
      %v425 = vunpack.c.l.b16 %v347
      %v426 = vunpack.c.h.b16 %v347
      %v427 = vunpack.c.l.b16 %v348
      %v428 = vunpack.c.h.b16 %v348
      %v429 = vunpack.c.l.b16 %v349
      %v430 = vunpack.c.h.b16 %v349
      %v431 = vunpack.c.l.b16 %v350
      %v432 = vunpack.c.h.b16 %v350
      %v433 = vunpack.c.l.b16 %v351
      %v434 = vunpack.c.h.b16 %v351
      %v435 = vunpack.c.l.b16 %v352
      %v436 = vunpack.c.h.b16 %v352
      %v437 = vunpack.c.l.b16 %v353
      %v438 = vunpack.c.h.b16 %v353
      %v439 = vunpack.c.l.b16 %v354
      %v440 = vunpack.c.h.b16 %v354
      %v441 = vunpack.c.l.b16 %v355
      %v442 = vunpack.c.h.b16 %v355
      %v443 = vunpack.c.l.b16 %v356
      %v444 = vunpack.c.h.b16 %v356
      %v445 = vunpack.c.l.b16 %v357
      %v446 = vunpack.c.h.b16 %v357
      %v447 = vunpack.c.l.b16 %v358
      %v448 = vunpack.c.h.b16 %v358
      %v449 = vunpack.c.l.b16 %v359
      %v450 = vunpack.c.h.b16 %v359
      %v451 = vunpack.c.l.b16 %v360
      %v452 = vunpack.c.h.b16 %v360
      %v453 = vpack.c.b16 %v407, %v405
      %v454 = vpack.c.b16 %v408, %v406
      %v455 = vpack.c.b16 %v411, %v409
      %v456 = vpack.c.b16 %v412, %v410
      %v457 = vpack.c.b16 %v415, %v413
      %v458 = vpack.c.b16 %v416, %v414
      %v459 = vpack.c.b16 %v419, %v417
      %v460 = vpack.c.b16 %v420, %v418
      %v461 = vpack.c.b16 %v423, %v421
      %v462 = vpack.c.b16 %v424, %v422
      %v463 = vpack.c.b16 %v427, %v425
      %v464 = vpack.c.b16 %v428, %v426
      %v465 = vpack.c.b16 %v431, %v429
      %v466 = vpack.c.b16 %v432, %v430
      %v467 = vpack.c.b16 %v435, %v433
      %v468 = vpack.c.b16 %v436, %v434
      %v469 = vpack.c.b16 %v439, %v437
      %v470 = vpack.c.b16 %v440, %v438
      %v471 = vpack.c.b16 %v443, %v441
      %v472 = vpack.c.b16 %v444, %v442
      %v473 = vpack.c.b16 %v447, %v445
      %v474 = vpack.c.b16 %v448, %v446
      %v475 = vpack.c.b16 %v451, %v449
      %v476 = vpack.c.b16 %v452, %v450
      %v509 = vunpack.c.l.b16 %v361
      %v510 = vunpack.c.h.b16 %v361
      %v511 = vunpack.c.l.b16 %v362
      %v512 = vunpack.c.h.b16 %v362
      %v513 = vunpack.c.l.b16 %v363
      %v514 = vunpack.c.h.b16 %v363
      %v515 = vunpack.c.l.b16 %v364
      %v516 = vunpack.c.h.b16 %v364
      %v517 = vunpack.c.l.b16 %v365
      %v518 = vunpack.c.h.b16 %v365
      %v519 = vunpack.c.l.b16 %v366
      %v520 = vunpack.c.h.b16 %v366
      %v521 = vunpack.c.l.b16 %v367
      %v522 = vunpack.c.h.b16 %v367
      %v523 = vunpack.c.l.b16 %v368
      %v524 = vunpack.c.h.b16 %v368
      %v525 = vunpack.c.l.b16 %v369
      %v526 = vunpack.c.h.b16 %v369
      %v527 = vunpack.c.l.b16 %v370
      %v528 = vunpack.c.h.b16 %v370
      %v529 = vunpack.c.l.b16 %v371
      %v530 = vunpack.c.h.b16 %v371
      %v531 = vunpack.c.l.b16 %v372
      %v532 = vunpack.c.h.b16 %v372
      %v533 = vunpack.c.l.b16 %v373
      %v534 = vunpack.c.h.b16 %v373
      %v535 = vunpack.c.l.b16 %v374
      %v536 = vunpack.c.h.b16 %v374
      %v537 = vunpack.c.l.b16 %v375
      %v538 = vunpack.c.h.b16 %v375
      %v539 = vunpack.c.l.b16 %v376
      %v540 = vunpack.c.h.b16 %v376
      %v541 = vunpack.c.l.b16 %v377
      %v542 = vunpack.c.h.b16 %v377
      %v543 = vunpack.c.l.b16 %v378
      %v544 = vunpack.c.h.b16 %v378
      %v545 = vunpack.c.l.b16 %v379
      %v546 = vunpack.c.h.b16 %v379
      %v547 = vunpack.c.l.b16 %v380
      %v548 = vunpack.c.h.b16 %v380
      %v549 = vpack.c.b16 %v511, %v509
      %v550 = vpack.c.b16 %v512, %v510
      %v551 = vpack.c.b16 %v515, %v513
      %v552 = vpack.c.b16 %v516, %v514
      %v553 = vpack.c.b16 %v519, %v517
      %v554 = vpack.c.b16 %v520, %v518
      %v555 = vpack.c.b16 %v523, %v521
      %v556 = vpack.c.b16 %v524, %v522
      %v557 = vpack.c.b16 %v527, %v525
      %v558 = vpack.c.b16 %v528, %v526
      %v559 = vpack.c.b16 %v531, %v529
      %v560 = vpack.c.b16 %v532, %v530
      %v561 = vpack.c.b16 %v535, %v533
      %v562 = vpack.c.b16 %v536, %v534
      %v563 = vpack.c.b16 %v539, %v537
      %v564 = vpack.c.b16 %v540, %v538
      %v565 = vpack.c.b16 %v543, %v541
      %v566 = vpack.c.b16 %v544, %v542
      %v567 = vpack.c.b16 %v547, %v545
      %v568 = vpack.c.b16 %v548, %v546
      %vm589 = vcmask 261120
      %v591 = vsel %vm589, %v454, 0
      %v594 = vsel %vm589, %v456, 0
      %v597 = vsel %vm589, %v458, 0
      %v600 = vsel %vm589, %v460, 0
      %v603 = vsel %vm589, %v462, 0
      %v606 = vsel %vm589, %v464, 0
      %v609 = vsel %vm589, %v466, 0
      %v612 = vsel %vm589, %v468, 0
      %v615 = vsel %vm589, %v470, 0
      %v618 = vsel %vm589, %v472, 0
      %v621 = vsel %vm589, %v474, 0
      %v624 = vsel %vm589, %v476, 0
      %626 = vmatprep.subr.bf16.mxu0 %v550
      %627 = vmatpush1.bf16.msra.mxu0 %v549
      %628 = vmatprep.subr.bf16.mxu0 %v552
      %629 = vmatpush1.bf16.msra.mxu0 %v551
      %630 = vmatprep.subr.bf16.mxu0 %v554
      %631 = vmatpush1.bf16.msra.mxu0 %v553
      %632 = vmatprep.subr.bf16.mxu0 %v556
      %633 = vmatpush1.bf16.msra.mxu0 %v555
      %634 = vmatprep.subr.bf16.mxu0 %v558
      %635 = vmatpush1.bf16.msra.mxu0 %v557
      %636 = vmatprep.subr.bf16.mxu0 %v560
      %637 = vmatpush1.bf16.msra.mxu0 %v559
      %638 = vmatprep.subr.bf16.mxu0 %v562
      %639 = vmatpush1.bf16.msra.mxu0 %v561
      %640 = vmatprep.subr.bf16.mxu0 %v564
      %641 = vmatpush1.bf16.msra.mxu0 %v563
      %642 = vmatprep.subr.bf16.mxu0 %v566
      %643 = vmatpush1.bf16.msra.mxu0 %v565
      %644 = vmatprep.subr.bf16.mxu0 %v568
      %645 = vmatpush1.bf16.msra.mxu0 %v567
      %646 = vmatprep.subr.bf16.mxu0 0
      %647 = vmatpush1.bf16.msra.mxu0 0
      %648 = vmatprep.subr.bf16.mxu0 0
      %649 = vmatpush1.bf16.msra.mxu0 0
      %650 = vmatprep.subr.bf16.mxu0 0
      %651 = vmatpush1.bf16.msra.mxu0 0
      %652 = vmatprep.subr.bf16.mxu0 0
      %653 = vmatpush1.bf16.msra.mxu0 0
      %654 = vmatprep.subr.bf16.mxu0 0
      %655 = vmatpush1.bf16.msra.mxu0 0
      %656 = vmatprep.subr.bf16.mxu0 0
      %657 = vmatpush1.bf16.msra.mxu0 0
      %658 = vmatprep.mubr.bf16.mxu0 %v591
      %659 = vmatmul.mubr.bf16.gmra.mrb[0].mxu0 %v453
      %v660 = vpop.f32.mrb[0].mxu0
      %v661 = vadd.f32 0.0, %v660
      %v662 = vpop.f32.mrb[0].mxu0
      %v663 = vadd.f32 0.0, %v662
      %v664 = vpop.f32.mrb[0].mxu0
      %v665 = vadd.f32 0.0, %v664
      %v666 = vpop.f32.mrb[0].mxu0
      %v667 = vadd.f32 0.0, %v666
      %668 = vmatprep.mubr.bf16.mxu0 %v594
      %669 = vmatmul.mubr.bf16.gmra.mrb[0].mxu0 %v455
      %v670 = vpop.f32.mrb[0].mxu0
      %v671 = vadd.f32 0.0, %v670
      %v672 = vpop.f32.mrb[0].mxu0
      %v673 = vadd.f32 0.0, %v672
      %v674 = vpop.f32.mrb[0].mxu0
      %v675 = vadd.f32 0.0, %v674
      %v676 = vpop.f32.mrb[0].mxu0
      %v677 = vadd.f32 0.0, %v676
      %678 = vmatprep.mubr.bf16.mxu0 %v597
      %679 = vmatmul.mubr.bf16.gmra.mrb[0].mxu0 %v457
      %v680 = vpop.f32.mrb[0].mxu0
      %v681 = vadd.f32 0.0, %v680
      %v682 = vpop.f32.mrb[0].mxu0
      %v683 = vadd.f32 0.0, %v682
      %v684 = vpop.f32.mrb[0].mxu0
      %v685 = vadd.f32 0.0, %v684
      %v686 = vpop.f32.mrb[0].mxu0
      %v687 = vadd.f32 0.0, %v686
      %688 = vmatprep.mubr.bf16.mxu0 %v600
      %689 = vmatmul.mubr.bf16.gmra.mrb[0].mxu0 %v459
      %v690 = vpop.f32.mrb[0].mxu0
      %v691 = vadd.f32 0.0, %v690
      %v692 = vpop.f32.mrb[0].mxu0
      %v693 = vadd.f32 0.0, %v692
      %v694 = vpop.f32.mrb[0].mxu0
      %v695 = vadd.f32 0.0, %v694
      %v696 = vpop.f32.mrb[0].mxu0
      %v697 = vadd.f32 0.0, %v696
      %698 = vmatprep.mubr.bf16.mxu0 %v603
      %699 = vmatmul.mubr.bf16.gmra.mrb[0].mxu0 %v461
      %v700 = vpop.f32.mrb[0].mxu0
      %v701 = vadd.f32 0.0, %v700
      %v702 = vpop.f32.mrb[0].mxu0
      %v703 = vadd.f32 0.0, %v702
      %v704 = vpop.f32.mrb[0].mxu0
      %v705 = vadd.f32 0.0, %v704
      %v706 = vpop.f32.mrb[0].mxu0
      %v707 = vadd.f32 0.0, %v706
      %708 = vmatprep.mubr.bf16.mxu0 %v606
      %709 = vmatmul.mubr.bf16.gmra.mrb[0].mxu0 %v463
      %v710 = vpop.f32.mrb[0].mxu0
      %v711 = vadd.f32 0.0, %v710
      %v712 = vpop.f32.mrb[0].mxu0
      %v713 = vadd.f32 0.0, %v712
      %v714 = vpop.f32.mrb[0].mxu0
      %v715 = vadd.f32 0.0, %v714
      %v716 = vpop.f32.mrb[0].mxu0
      %v717 = vadd.f32 0.0, %v716
      %718 = vmatprep.mubr.bf16.mxu0 %v609
      %719 = vmatmul.mubr.bf16.gmra.mrb[0].mxu0 %v465
      %v720 = vpop.f32.mrb[0].mxu0
      %v721 = vadd.f32 0.0, %v720
      %v722 = vpop.f32.mrb[0].mxu0
      %v723 = vadd.f32 0.0, %v722
      %v724 = vpop.f32.mrb[0].mxu0
      %v725 = vadd.f32 0.0, %v724
      %v726 = vpop.f32.mrb[0].mxu0
      %v727 = vadd.f32 0.0, %v726
      %728 = vmatprep.mubr.bf16.mxu0 %v612
      %729 = vmatmul.mubr.bf16.gmra.mrb[0].mxu0 %v467
      %v730 = vpop.f32.mrb[0].mxu0
      %v731 = vadd.f32 0.0, %v730
      %v732 = vpop.f32.mrb[0].mxu0
      %v733 = vadd.f32 0.0, %v732
      %v734 = vpop.f32.mrb[0].mxu0
      %v735 = vadd.f32 0.0, %v734
      %v736 = vpop.f32.mrb[0].mxu0
      %v737 = vadd.f32 0.0, %v736
      %738 = vmatprep.mubr.bf16.mxu0 %v615
      %739 = vmatmul.mubr.bf16.gmra.mrb[0].mxu0 %v469
      %v740 = vpop.f32.mrb[0].mxu0
      %v741 = vadd.f32 0.0, %v740
      %v742 = vpop.f32.mrb[0].mxu0
      %v743 = vadd.f32 0.0, %v742
      %v744 = vpop.f32.mrb[0].mxu0
      %v745 = vadd.f32 0.0, %v744
      %v746 = vpop.f32.mrb[0].mxu0
      %v747 = vadd.f32 0.0, %v746
      %748 = vmatprep.mubr.bf16.mxu0 %v618
      %749 = vmatmul.mubr.bf16.gmra.mrb[0].mxu0 %v471
      %v750 = vpop.f32.mrb[0].mxu0
      %v751 = vadd.f32 0.0, %v750
      %v752 = vpop.f32.mrb[0].mxu0
      %v753 = vadd.f32 0.0, %v752
      %v754 = vpop.f32.mrb[0].mxu0
      %v755 = vadd.f32 0.0, %v754
      %v756 = vpop.f32.mrb[0].mxu0
      %v757 = vadd.f32 0.0, %v756
      %758 = vmatprep.mubr.bf16.mxu0 %v621
      %759 = vmatmul.mubr.bf16.gmra.mrb[0].mxu0 %v473
      %v760 = vpop.f32.mrb[0].mxu0
      %v761 = vadd.f32 0.0, %v760
      %v762 = vpop.f32.mrb[0].mxu0
      %v763 = vadd.f32 0.0, %v762
      %v764 = vpop.f32.mrb[0].mxu0
      %v765 = vadd.f32 0.0, %v764
      %v766 = vpop.f32.mrb[0].mxu0
      %v767 = vadd.f32 0.0, %v766
      %768 = vmatprep.mubr.bf16.mxu0 %v624
      %769 = vmatmul.mubr.bf16.gmra.mrb[0].mxu0 %v475
      %v770 = vpop.f32.mrb[0].mxu0
      %v771 = vadd.f32 0.0, %v770
      %v772 = vpop.f32.mrb[0].mxu0
      %v773 = vadd.f32 0.0, %v772
      %v774 = vpop.f32.mrb[0].mxu0
      %v775 = vadd.f32 0.0, %v774
      %v776 = vpop.f32.mrb[0].mxu0
      %v777 = vadd.f32 0.0, %v776
      %778 = vdwg.mxu0
      %v779 = vmax.f32 %v661, %v721
      %v780 = vmax.f32 %v663, %v723
      %v781 = vmax.f32 %v665, %v725
      %v782 = vmax.f32 %v667, %v727
      %v783 = vmax.f32 %v671, %v731
      %v784 = vmax.f32 %v673, %v733
      %v785 = vmax.f32 %v675, %v735
      %v786 = vmax.f32 %v677, %v737
      %v787 = vmax.f32 %v681, %v741
      %v788 = vmax.f32 %v683, %v743
      %v789 = vmax.f32 %v685, %v745
      %v790 = vmax.f32 %v687, %v747
      %v791 = vmax.f32 %v691, %v751
      %v792 = vmax.f32 %v693, %v753
      %v793 = vmax.f32 %v695, %v755
      %v794 = vmax.f32 %v697, %v757
      %v795 = vmax.f32 %v701, %v761
      %v796 = vmax.f32 %v703, %v763
      %v797 = vmax.f32 %v705, %v765
      %v798 = vmax.f32 %v707, %v767
      %v799 = vmax.f32 %v711, %v771
      %v800 = vmax.f32 %v713, %v773
      %v801 = vmax.f32 %v715, %v775
      %v802 = vmax.f32 %v717, %v777
      %v803 = vld [vmem:[%s2] sm:$0x3]
      %v805 = vlaneseq
      %v806 = vshrl.u32 %v805, 7
      %v807 = vsub.s32 0, %v806
      %v808 = vrot.slane %v803, %v807
      %v809 = vlaneseq
      %v810 = vshrl.u32 %v809, 7
      %v811 = vsub.s32 1, %v810
      %v812 = vrot.slane %v803, %v811
      %v815 = vadd.f32 %v779, %v808
      %v816 = vadd.f32 %v780, %v812
      %v817 = vadd.f32 %v781, %v808
      %v818 = vadd.f32 %v782, %v812
      %v819 = vadd.f32 %v783, %v808
      %v820 = vadd.f32 %v784, %v812
      %v821 = vadd.f32 %v785, %v808
      %v822 = vadd.f32 %v786, %v812
      %v823 = vadd.f32 %v787, %v808
      %v824 = vadd.f32 %v788, %v812
      %v825 = vadd.f32 %v789, %v808
      %v826 = vadd.f32 %v790, %v812
      %v827 = vadd.f32 %v791, %v808
      %v828 = vadd.f32 %v792, %v812
      %v829 = vadd.f32 %v793, %v808
      %v830 = vadd.f32 %v794, %v812
      %v831 = vadd.f32 %v795, %v808
      %v832 = vadd.f32 %v796, %v812
      %v833 = vadd.f32 %v797, %v808
      %v834 = vadd.f32 %v798, %v812
      %v835 = vadd.f32 %v799, %v808
      %v836 = vadd.f32 %v800, %v812
      %v837 = vadd.f32 %v801, %v808
      %v838 = vadd.f32 %v802, %v812
      %v839 = vmax.f32 %v815, 0.0
      %v840 = vmax.f32 %v816, 0.0
      %v841 = vmax.f32 %v817, 0.0
      %v842 = vmax.f32 %v818, 0.0
      %v843 = vmax.f32 %v819, 0.0
      %v844 = vmax.f32 %v820, 0.0
      %v845 = vmax.f32 %v821, 0.0
      %v846 = vmax.f32 %v822, 0.0
      %v847 = vmax.f32 %v823, 0.0
      %v848 = vmax.f32 %v824, 0.0
      %v849 = vmax.f32 %v825, 0.0
      %v850 = vmax.f32 %v826, 0.0
      %v851 = vmax.f32 %v827, 0.0
      %v852 = vmax.f32 %v828, 0.0
      %v853 = vmax.f32 %v829, 0.0
      %v854 = vmax.f32 %v830, 0.0
      %v855 = vmax.f32 %v831, 0.0
      %v856 = vmax.f32 %v832, 0.0
      %v857 = vmax.f32 %v833, 0.0
      %v858 = vmax.f32 %v834, 0.0
      %v859 = vmax.f32 %v835, 0.0
      %v860 = vmax.f32 %v836, 0.0
      %v861 = vmax.f32 %v837, 0.0
      %v862 = vmax.f32 %v838, 0.0
      %v863 = vmax.f32 %v839, %v840
      %v864 = vmax.f32 %v841, %v842
      %v865 = vmax.f32 %v843, %v844
      %v866 = vmax.f32 %v845, %v846
      %v867 = vmax.f32 %v847, %v848
      %v868 = vmax.f32 %v849, %v850
      %v869 = vmax.f32 %v851, %v852
      %v870 = vmax.f32 %v853, %v854
      %v871 = vmax.f32 %v855, %v856
      %v872 = vmax.f32 %v857, %v858
      %v873 = vmax.f32 %v859, %v860
      %v874 = vmax.f32 %v861, %v862
      %v875 = vpack.c.bf16 %v864, %v863
      %v876 = vpack.c.bf16 %v865, %v864
      %v877 = vpack.c.bf16 %v866, %v865
      %v878 = vpack.c.bf16 %v867, %v866
      %v879 = vpack.c.bf16 %v868, %v867
      %v880 = vpack.c.bf16 %v869, %v868
      %v881 = vpack.c.bf16 %v870, %v869
      %v882 = vpack.c.bf16 %v871, %v870
      %v883 = vpack.c.bf16 %v872, %v871
      %v884 = vpack.c.bf16 %v873, %v872
      %v885 = vpack.c.bf16 %v874, %v873
      %v886 = vld [vmem:[%s3] sm:$0xff]
      %v887 = vld [vmem:[%s3 + $0x8] sm:$0xff]
      %v888 = vld [vmem:[%s3 + $0x10] sm:$0xff]
      %v889 = vld [vmem:[%s3 + $0x18] sm:$0xff]
      %v890 = vld [vmem:[%s3 + $0x20] sm:$0xff]
      %v891 = vld [vmem:[%s3 + $0x28] sm:$0xff]
      %v892 = vld [vmem:[%s3 + $0x30] sm:$0xff]
      %v893 = vld [vmem:[%s3 + $0x38] sm:$0xff]
      %v894 = vld [vmem:[%s3 + $0x40] sm:$0xff]
      %v895 = vld [vmem:[%s3 + $0x48] sm:$0xff]
      %v896 = vld [vmem:[%s3 + $0x50] sm:$0xff]
      %v897 = vld [vmem:[%s3 + $0x58] sm:$0xff]
      %v898 = vld [vmem:[%s3 + $0x60] sm:$0xff]
      %v899 = vld [vmem:[%s3 + $0x68] sm:$0xff]
      %v900 = vld [vmem:[%s3 + $0x70] sm:$0xff]
      %v901 = vld [vmem:[%s3 + $0x78] sm:$0xff]
      %v902 = vld [vmem:[%s3 + $0x80] sm:$0xff]
      %v903 = vld [vmem:[%s3 + $0x88] sm:$0xff]
      %v904 = vld [vmem:[%s3 + $0x90] sm:$0xff]
      %v905 = vld [vmem:[%s3 + $0x98] sm:$0xff]
      %v906 = vld [vmem:[%s3 + $0xa0] sm:$0xff]
      %v907 = vld [vmem:[%s3 + $0xa8] sm:$0xff]
      %v908 = vld [vmem:[%s3 + $0xb0] sm:$0xff]
      %v909 = vld [vmem:[%s3 + $0xb8] sm:$0xff]
      %v910 = vld [vmem:[%s3 + $0xc0] sm:$0xff]
      %v911 = vld [vmem:[%s3 + $0xc8] sm:$0xff]
      %v912 = vld [vmem:[%s3 + $0xd0] sm:$0xff]
      %v913 = vld [vmem:[%s3 + $0xd8] sm:$0xff]
      %v914 = vld [vmem:[%s3 + $0xe0] sm:$0xff]
      %v915 = vld [vmem:[%s3 + $0xe8] sm:$0xff]
      %v916 = vld [vmem:[%s3 + $0xf0] sm:$0xff]
      %v917 = vld [vmem:[%s3 + $0xf8] sm:$0xff]
      %v918 = vld [vmem:[%s3 + $0x100] sm:$0xff]
      %v919 = vld [vmem:[%s3 + $0x108] sm:$0xff]
      %v920 = vld [vmem:[%s3 + $0x110] sm:$0xff]
      %v921 = vld [vmem:[%s3 + $0x118] sm:$0xff]
      %v922 = vld [vmem:[%s3 + $0x120] sm:$0xff]
      %v923 = vld [vmem:[%s3 + $0x128] sm:$0xff]
      %v924 = vld [vmem:[%s3 + $0x130] sm:$0xff]
      %v925 = vld [vmem:[%s3 + $0x138] sm:$0xff]
      %v926 = vld [vmem:[%s3 + $0x140] sm:$0xff]
      %v927 = vld [vmem:[%s3 + $0x148] sm:$0xff]
      %v928 = vld [vmem:[%s3 + $0x150] sm:$0xff]
      %v929 = vld [vmem:[%s3 + $0x158] sm:$0xff]
      %v930 = vld [vmem:[%s3 + $0x160] sm:$0xff]
      %v931 = vld [vmem:[%s3 + $0x168] sm:$0xff]
      %v932 = vld [vmem:[%s3 + $0x170] sm:$0xff]
      %v933 = vld [vmem:[%s3 + $0x178] sm:$0xff]
      %v934 = vld [vmem:[%s3 + $0x180] sm:$0xff]
      %v935 = vld [vmem:[%s3 + $0x188] sm:$0xff]
      %v936 = vld [vmem:[%s3 + $0x190] sm:$0xff]
      %v937 = vld [vmem:[%s3 + $0x198] sm:$0xff]
      %v938 = vld [vmem:[%s3 + $0x1a0] sm:$0xff]
      %v939 = vld [vmem:[%s3 + $0x1a8] sm:$0xff]
      %v940 = vld [vmem:[%s3 + $0x1b0] sm:$0xff]
      %v941 = vld [vmem:[%s3 + $0x1b8] sm:$0xff]
      %v942 = vld [vmem:[%s3 + $0x1c0] sm:$0xff]
      %v943 = vld [vmem:[%s3 + $0x1c8] sm:$0xff]
      %v944 = vld [vmem:[%s3 + $0x1d0] sm:$0xff]
      %v945 = vld [vmem:[%s3 + $0x1d8] sm:$0xff]
      %v946 = vld [vmem:[%s3 + $0x1e0] sm:$0xff]
      %v947 = vld [vmem:[%s3 + $0x1e8] sm:$0xff]
      %v948 = vld [vmem:[%s3 + $0x1f0] sm:$0xff]
      %v949 = vld [vmem:[%s3 + $0x1f8] sm:$0xff]
      %v950 = vld [vmem:[%s3 + $0x200] sm:$0xff]
      %v951 = vld [vmem:[%s3 + $0x208] sm:$0xff]
      %v952 = vld [vmem:[%s3 + $0x210] sm:$0xff]
      %v953 = vld [vmem:[%s3 + $0x218] sm:$0xff]
      %v954 = vld [vmem:[%s3 + $0x220] sm:$0xff]
      %v955 = vld [vmem:[%s3 + $0x228] sm:$0xff]
      %v956 = vld [vmem:[%s3 + $0x230] sm:$0xff]
      %v957 = vld [vmem:[%s3 + $0x238] sm:$0xff]
      %v958 = vld [vmem:[%s3 + $0x240] sm:$0xff]
      %v959 = vld [vmem:[%s3 + $0x248] sm:$0xff]
      %v960 = vld [vmem:[%s3 + $0x250] sm:$0xff]
      %v961 = vld [vmem:[%s3 + $0x258] sm:$0xff]
      %v962 = vld [vmem:[%s3 + $0x260] sm:$0xff]
      %v963 = vld [vmem:[%s3 + $0x268] sm:$0xff]
      %v964 = vld [vmem:[%s3 + $0x270] sm:$0xff]
      %v965 = vld [vmem:[%s3 + $0x278] sm:$0xff]
      %v966 = vld [vmem:[%s4] sm:$0x3]
      %v968 = vlaneseq
      %v969 = vshrl.u32 %v968, 7
      %v970 = vsub.s32 0, %v969
      %v971 = vrot.slane %v966, %v970
      %v972 = vlaneseq
      %v973 = vshrl.u32 %v972, 7
      %v974 = vsub.s32 1, %v973
      %v975 = vrot.slane %v966, %v974
      %v1058 = vunpack.c.l.b16 %v886
      %v1059 = vunpack.c.h.b16 %v886
      %v1060 = vunpack.c.l.b16 %v887
      %v1061 = vunpack.c.h.b16 %v887
      %v1062 = vunpack.c.l.b16 %v888
      %v1063 = vunpack.c.h.b16 %v888
      %v1064 = vunpack.c.l.b16 %v889
      %v1065 = vunpack.c.h.b16 %v889
      %v1066 = vunpack.c.l.b16 %v890
      %v1067 = vunpack.c.h.b16 %v890
      %v1068 = vunpack.c.l.b16 %v891
      %v1069 = vunpack.c.h.b16 %v891
      %v1070 = vunpack.c.l.b16 %v892
      %v1071 = vunpack.c.h.b16 %v892
      %v1072 = vunpack.c.l.b16 %v893
      %v1073 = vunpack.c.h.b16 %v893
      %v1074 = vunpack.c.l.b16 %v894
      %v1075 = vunpack.c.h.b16 %v894
      %v1076 = vunpack.c.l.b16 %v895
      %v1077 = vunpack.c.h.b16 %v895
      %v1078 = vunpack.c.l.b16 %v896
      %v1079 = vunpack.c.h.b16 %v896
      %v1080 = vunpack.c.l.b16 %v897
      %v1081 = vunpack.c.h.b16 %v897
      %v1082 = vunpack.c.l.b16 %v898
      %v1083 = vunpack.c.h.b16 %v898
      %v1084 = vunpack.c.l.b16 %v899
      %v1085 = vunpack.c.h.b16 %v899
      %v1086 = vunpack.c.l.b16 %v900
      %v1087 = vunpack.c.h.b16 %v900
      %v1088 = vunpack.c.l.b16 %v901
      %v1089 = vunpack.c.h.b16 %v901
      %v1090 = vunpack.c.l.b16 %v902
      %v1091 = vunpack.c.h.b16 %v902
      %v1092 = vunpack.c.l.b16 %v903
      %v1093 = vunpack.c.h.b16 %v903
      %v1094 = vunpack.c.l.b16 %v904
      %v1095 = vunpack.c.h.b16 %v904
      %v1096 = vunpack.c.l.b16 %v905
      %v1097 = vunpack.c.h.b16 %v905
      %v1098 = vunpack.c.l.b16 %v906
      %v1099 = vunpack.c.h.b16 %v906
      %v1100 = vunpack.c.l.b16 %v907
      %v1101 = vunpack.c.h.b16 %v907
      %v1102 = vunpack.c.l.b16 %v908
      %v1103 = vunpack.c.h.b16 %v908
      %v1104 = vunpack.c.l.b16 %v909
      %v1105 = vunpack.c.h.b16 %v909
      %v1106 = vunpack.c.l.b16 %v910
      %v1107 = vunpack.c.h.b16 %v910
      %v1108 = vunpack.c.l.b16 %v911
      %v1109 = vunpack.c.h.b16 %v911
      %v1110 = vunpack.c.l.b16 %v912
      %v1111 = vunpack.c.h.b16 %v912
      %v1112 = vunpack.c.l.b16 %v913
      %v1113 = vunpack.c.h.b16 %v913
      %v1114 = vunpack.c.l.b16 %v914
      %v1115 = vunpack.c.h.b16 %v914
      %v1116 = vunpack.c.l.b16 %v915
      %v1117 = vunpack.c.h.b16 %v915
      %v1118 = vunpack.c.l.b16 %v916
      %v1119 = vunpack.c.h.b16 %v916
      %v1120 = vunpack.c.l.b16 %v917
      %v1121 = vunpack.c.h.b16 %v917
      %v1122 = vunpack.c.l.b16 %v918
      %v1123 = vunpack.c.h.b16 %v918
      %v1124 = vunpack.c.l.b16 %v919
      %v1125 = vunpack.c.h.b16 %v919
      %v1126 = vunpack.c.l.b16 %v920
      %v1127 = vunpack.c.h.b16 %v920
      %v1128 = vunpack.c.l.b16 %v921
      %v1129 = vunpack.c.h.b16 %v921
      %v1130 = vunpack.c.l.b16 %v922
      %v1131 = vunpack.c.h.b16 %v922
      %v1132 = vunpack.c.l.b16 %v923
      %v1133 = vunpack.c.h.b16 %v923
      %v1134 = vunpack.c.l.b16 %v924
      %v1135 = vunpack.c.h.b16 %v924
      %v1136 = vunpack.c.l.b16 %v925
      %v1137 = vunpack.c.h.b16 %v925
      %v1138 = vunpack.c.l.b16 %v926
      %v1139 = vunpack.c.h.b16 %v926
      %v1140 = vunpack.c.l.b16 %v927
      %v1141 = vunpack.c.h.b16 %v927
      %v1142 = vunpack.c.l.b16 %v928
      %v1143 = vunpack.c.h.b16 %v928
      %v1144 = vunpack.c.l.b16 %v929
      %v1145 = vunpack.c.h.b16 %v929
      %v1146 = vunpack.c.l.b16 %v930
      %v1147 = vunpack.c.h.b16 %v930
      %v1148 = vunpack.c.l.b16 %v931
      %v1149 = vunpack.c.h.b16 %v931
      %v1150 = vunpack.c.l.b16 %v932
      %v1151 = vunpack.c.h.b16 %v932
      %v1152 = vunpack.c.l.b16 %v933
      %v1153 = vunpack.c.h.b16 %v933
      %v1154 = vunpack.c.l.b16 %v934
      %v1155 = vunpack.c.h.b16 %v934
      %v1156 = vunpack.c.l.b16 %v935
      %v1157 = vunpack.c.h.b16 %v935
      %v1158 = vunpack.c.l.b16 %v936
      %v1159 = vunpack.c.h.b16 %v936
      %v1160 = vunpack.c.l.b16 %v937
      %v1161 = vunpack.c.h.b16 %v937
      %v1162 = vunpack.c.l.b16 %v938
      %v1163 = vunpack.c.h.b16 %v938
      %v1164 = vunpack.c.l.b16 %v939
      %v1165 = vunpack.c.h.b16 %v939
      %v1166 = vunpack.c.l.b16 %v940
      %v1167 = vunpack.c.h.b16 %v940
      %v1168 = vunpack.c.l.b16 %v941
      %v1169 = vunpack.c.h.b16 %v941
      %v1170 = vunpack.c.l.b16 %v942
      %v1171 = vunpack.c.h.b16 %v942
      %v1172 = vunpack.c.l.b16 %v943
      %v1173 = vunpack.c.h.b16 %v943
      %v1174 = vunpack.c.l.b16 %v944
      %v1175 = vunpack.c.h.b16 %v944
      %v1176 = vunpack.c.l.b16 %v945
      %v1177 = vunpack.c.h.b16 %v945
      %v1178 = vunpack.c.l.b16 %v946
      %v1179 = vunpack.c.h.b16 %v946
      %v1180 = vunpack.c.l.b16 %v947
      %v1181 = vunpack.c.h.b16 %v947
      %v1182 = vunpack.c.l.b16 %v948
      %v1183 = vunpack.c.h.b16 %v948
      %v1184 = vunpack.c.l.b16 %v949
      %v1185 = vunpack.c.h.b16 %v949
      %v1186 = vunpack.c.l.b16 %v950
      %v1187 = vunpack.c.h.b16 %v950
      %v1188 = vunpack.c.l.b16 %v951
      %v1189 = vunpack.c.h.b16 %v951
      %v1190 = vunpack.c.l.b16 %v952
      %v1191 = vunpack.c.h.b16 %v952
      %v1192 = vunpack.c.l.b16 %v953
      %v1193 = vunpack.c.h.b16 %v953
      %v1194 = vunpack.c.l.b16 %v954
      %v1195 = vunpack.c.h.b16 %v954
      %v1196 = vunpack.c.l.b16 %v955
      %v1197 = vunpack.c.h.b16 %v955
      %v1198 = vunpack.c.l.b16 %v956
      %v1199 = vunpack.c.h.b16 %v956
      %v1200 = vunpack.c.l.b16 %v957
      %v1201 = vunpack.c.h.b16 %v957
      %v1202 = vunpack.c.l.b16 %v958
      %v1203 = vunpack.c.h.b16 %v958
      %v1204 = vunpack.c.l.b16 %v959
      %v1205 = vunpack.c.h.b16 %v959
      %v1206 = vunpack.c.l.b16 %v960
      %v1207 = vunpack.c.h.b16 %v960
      %v1208 = vunpack.c.l.b16 %v961
      %v1209 = vunpack.c.h.b16 %v961
      %v1210 = vunpack.c.l.b16 %v962
      %v1211 = vunpack.c.h.b16 %v962
      %v1212 = vunpack.c.l.b16 %v963
      %v1213 = vunpack.c.h.b16 %v963
      %v1214 = vunpack.c.l.b16 %v964
      %v1215 = vunpack.c.h.b16 %v964
      %v1216 = vunpack.c.l.b16 %v965
      %v1217 = vunpack.c.h.b16 %v965
      %v1218 = vpack.c.b16 %v1060, %v1058
      %v1219 = vpack.c.b16 %v1061, %v1059
      %v1220 = vpack.c.b16 %v1064, %v1062
      %v1221 = vpack.c.b16 %v1065, %v1063
      %v1222 = vpack.c.b16 %v1068, %v1066
      %v1223 = vpack.c.b16 %v1069, %v1067
      %v1224 = vpack.c.b16 %v1072, %v1070
      %v1225 = vpack.c.b16 %v1073, %v1071
      %v1226 = vpack.c.b16 %v1076, %v1074
      %v1227 = vpack.c.b16 %v1077, %v1075
      %v1228 = vpack.c.b16 %v1080, %v1078
      %v1229 = vpack.c.b16 %v1081, %v1079
      %v1230 = vpack.c.b16 %v1084, %v1082
      %v1231 = vpack.c.b16 %v1085, %v1083
      %v1232 = vpack.c.b16 %v1088, %v1086
      %v1233 = vpack.c.b16 %v1089, %v1087
      %v1234 = vpack.c.b16 %v1092, %v1090
      %v1235 = vpack.c.b16 %v1093, %v1091
      %v1236 = vpack.c.b16 %v1096, %v1094
      %v1237 = vpack.c.b16 %v1097, %v1095
      %v1238 = vpack.c.b16 %v1100, %v1098
      %v1239 = vpack.c.b16 %v1101, %v1099
      %v1240 = vpack.c.b16 %v1104, %v1102
      %v1241 = vpack.c.b16 %v1105, %v1103
      %v1242 = vpack.c.b16 %v1108, %v1106
      %v1243 = vpack.c.b16 %v1109, %v1107
      %v1244 = vpack.c.b16 %v1112, %v1110
      %v1245 = vpack.c.b16 %v1113, %v1111
      %v1246 = vpack.c.b16 %v1116, %v1114
      %v1247 = vpack.c.b16 %v1117, %v1115
      %v1248 = vpack.c.b16 %v1120, %v1118
      %v1249 = vpack.c.b16 %v1121, %v1119
      %v1250 = vpack.c.b16 %v1124, %v1122
      %v1251 = vpack.c.b16 %v1125, %v1123
      %v1252 = vpack.c.b16 %v1128, %v1126
      %v1253 = vpack.c.b16 %v1129, %v1127
      %v1254 = vpack.c.b16 %v1132, %v1130
      %v1255 = vpack.c.b16 %v1133, %v1131
      %v1256 = vpack.c.b16 %v1136, %v1134
      %v1257 = vpack.c.b16 %v1137, %v1135
      %v1258 = vpack.c.b16 %v1140, %v1138
      %v1259 = vpack.c.b16 %v1141, %v1139
      %v1260 = vpack.c.b16 %v1144, %v1142
      %v1261 = vpack.c.b16 %v1145, %v1143
      %v1262 = vpack.c.b16 %v1148, %v1146
      %v1263 = vpack.c.b16 %v1149, %v1147
      %v1264 = vpack.c.b16 %v1152, %v1150
      %v1265 = vpack.c.b16 %v1153, %v1151
      %v1266 = vpack.c.b16 %v1156, %v1154
      %v1267 = vpack.c.b16 %v1157, %v1155
      %v1268 = vpack.c.b16 %v1160, %v1158
      %v1269 = vpack.c.b16 %v1161, %v1159
      %v1270 = vpack.c.b16 %v1164, %v1162
      %v1271 = vpack.c.b16 %v1165, %v1163
      %v1272 = vpack.c.b16 %v1168, %v1166
      %v1273 = vpack.c.b16 %v1169, %v1167
      %v1274 = vpack.c.b16 %v1172, %v1170
      %v1275 = vpack.c.b16 %v1173, %v1171
      %v1276 = vpack.c.b16 %v1176, %v1174
      %v1277 = vpack.c.b16 %v1177, %v1175
      %v1278 = vpack.c.b16 %v1180, %v1178
      %v1279 = vpack.c.b16 %v1181, %v1179
      %v1280 = vpack.c.b16 %v1184, %v1182
      %v1281 = vpack.c.b16 %v1185, %v1183
      %v1282 = vpack.c.b16 %v1188, %v1186
      %v1283 = vpack.c.b16 %v1189, %v1187
      %v1284 = vpack.c.b16 %v1192, %v1190
      %v1285 = vpack.c.b16 %v1193, %v1191
      %v1286 = vpack.c.b16 %v1196, %v1194
      %v1287 = vpack.c.b16 %v1197, %v1195
      %v1288 = vpack.c.b16 %v1200, %v1198
      %v1289 = vpack.c.b16 %v1201, %v1199
      %v1290 = vpack.c.b16 %v1204, %v1202
      %v1291 = vpack.c.b16 %v1205, %v1203
      %v1292 = vpack.c.b16 %v1208, %v1206
      %v1293 = vpack.c.b16 %v1209, %v1207
      %v1294 = vpack.c.b16 %v1212, %v1210
      %v1295 = vpack.c.b16 %v1213, %v1211
      %v1296 = vpack.c.b16 %v1216, %v1214
      %v1297 = vpack.c.b16 %v1217, %v1215
      %1378 = vmatprep.subr.bf16.mxu0 %v1219
      %1379 = vmatpush1.bf16.msra.mxu0 %v1218
      %1380 = vmatprep.subr.bf16.mxu0 %v1221
      %1381 = vmatpush1.bf16.msra.mxu0 %v1220
      %1382 = vmatprep.subr.bf16.mxu0 %v1223
      %1383 = vmatpush1.bf16.msra.mxu0 %v1222
      %1384 = vmatprep.subr.bf16.mxu0 %v1225
      %1385 = vmatpush1.bf16.msra.mxu0 %v1224
      %1386 = vmatprep.subr.bf16.mxu0 %v1227
      %1387 = vmatpush1.bf16.msra.mxu0 %v1226
      %1388 = vmatprep.subr.bf16.mxu0 %v1229
      %1389 = vmatpush1.bf16.msra.mxu0 %v1228
      %1390 = vmatprep.subr.bf16.mxu0 %v1231
      %1391 = vmatpush1.bf16.msra.mxu0 %v1230
      %1392 = vmatprep.subr.bf16.mxu0 %v1233
      %1393 = vmatpush1.bf16.msra.mxu0 %v1232
      %1394 = vmatprep.subr.bf16.mxu0 %v1235
      %1395 = vmatpush1.bf16.msra.mxu0 %v1234
      %1396 = vmatprep.subr.bf16.mxu0 %v1237
      %1397 = vmatpush1.bf16.msra.mxu0 %v1236
      %1398 = vmatprep.subr.bf16.mxu0 %v1239
      %1399 = vmatpush1.bf16.msra.mxu0 %v1238
      %1400 = vmatprep.subr.bf16.mxu0 %v1241
      %1401 = vmatpush1.bf16.msra.mxu0 %v1240
      %1402 = vmatprep.subr.bf16.mxu0 %v1243
      %1403 = vmatpush1.bf16.msra.mxu0 %v1242
      %1404 = vmatprep.subr.bf16.mxu0 %v1245
      %1405 = vmatpush1.bf16.msra.mxu0 %v1244
      %1406 = vmatprep.subr.bf16.mxu0 %v1247
      %1407 = vmatpush1.bf16.msra.mxu0 %v1246
      %1408 = vmatprep.subr.bf16.mxu0 %v1249
      %1409 = vmatpush1.bf16.msra.mxu0 %v1248
      %1410 = vmatprep.mubr.bf16.mxu0 %v876
      %1411 = vmatmul.mubr.bf16.gmra.mrb[0].mxu0 %v875
      %v1412 = vpop.f32.mrb[0].mxu0
      %v1413 = vadd.f32 %v971, %v1412
      %v1414 = vpop.f32.mrb[0].mxu0
      %v1415 = vadd.f32 %v975, %v1414
      %v1416 = vpop.f32.mrb[0].mxu0
      %v1417 = vadd.f32 %v971, %v1416
      %v1418 = vpop.f32.mrb[0].mxu0
      %v1419 = vadd.f32 %v975, %v1418
      %1420 = vmatprep.mubr.bf16.mxu0 %v878
      %1421 = vmatmul.mubr.bf16.gmra.mrb[0].mxu0 %v877
      %v1422 = vpop.f32.mrb[0].mxu0
      %v1423 = vadd.f32 %v971, %v1422
      %v1424 = vpop.f32.mrb[0].mxu0
      %v1425 = vadd.f32 %v975, %v1424
      %v1426 = vpop.f32.mrb[0].mxu0
      %v1427 = vadd.f32 %v971, %v1426
      %v1428 = vpop.f32.mrb[0].mxu0
      %v1429 = vadd.f32 %v975, %v1428
      %1430 = vmatprep.mubr.bf16.mxu0 %v880
      %1431 = vmatmul.mubr.bf16.gmra.mrb[0].mxu0 %v879
      %v1432 = vpop.f32.mrb[0].mxu0
      %v1433 = vadd.f32 %v971, %v1432
      %v1434 = vpop.f32.mrb[0].mxu0
      %v1435 = vadd.f32 %v975, %v1434
      %v1436 = vpop.f32.mrb[0].mxu0
      %v1437 = vadd.f32 %v971, %v1436
      %v1438 = vpop.f32.mrb[0].mxu0
      %v1439 = vadd.f32 %v975, %v1438
      %1440 = vmatprep.mubr.bf16.mxu0 %v882
      %1441 = vmatmul.mubr.bf16.gmra.mrb[0].mxu0 %v881
      %v1442 = vpop.f32.mrb[0].mxu0
      %v1443 = vadd.f32 %v971, %v1442
      %v1444 = vpop.f32.mrb[0].mxu0
      %v1445 = vadd.f32 %v975, %v1444
      %v1446 = vpop.f32.mrb[0].mxu0
      %v1447 = vadd.f32 %v971, %v1446
      %v1448 = vpop.f32.mrb[0].mxu0
      %v1449 = vadd.f32 %v975, %v1448
      %1450 = vdwg.mxu0
      %1451 = vmatprep.subr.bf16.mxu0 %v1251
      %1452 = vmatpush1.bf16.msra.mxu0 %v1250
      %1453 = vmatprep.subr.bf16.mxu0 %v1253
      %1454 = vmatpush1.bf16.msra.mxu0 %v1252
      %1455 = vmatprep.subr.bf16.mxu0 %v1255
      %1456 = vmatpush1.bf16.msra.mxu0 %v1254
      %1457 = vmatprep.subr.bf16.mxu0 %v1257
      %1458 = vmatpush1.bf16.msra.mxu0 %v1256
      %1459 = vmatprep.subr.bf16.mxu0 %v1259
      %1460 = vmatpush1.bf16.msra.mxu0 %v1258
      %1461 = vmatprep.subr.bf16.mxu0 %v1261
      %1462 = vmatpush1.bf16.msra.mxu0 %v1260
      %1463 = vmatprep.subr.bf16.mxu0 %v1263
      %1464 = vmatpush1.bf16.msra.mxu0 %v1262
      %1465 = vmatprep.subr.bf16.mxu0 %v1265
      %1466 = vmatpush1.bf16.msra.mxu0 %v1264
      %1467 = vmatprep.subr.bf16.mxu0 %v1267
      %1468 = vmatpush1.bf16.msra.mxu0 %v1266
      %1469 = vmatprep.subr.bf16.mxu0 %v1269
      %1470 = vmatpush1.bf16.msra.mxu0 %v1268
      %1471 = vmatprep.subr.bf16.mxu0 %v1271
      %1472 = vmatpush1.bf16.msra.mxu0 %v1270
      %1473 = vmatprep.subr.bf16.mxu0 %v1273
      %1474 = vmatpush1.bf16.msra.mxu0 %v1272
      %1475 = vmatprep.subr.bf16.mxu0 %v1275
      %1476 = vmatpush1.bf16.msra.mxu0 %v1274
      %1477 = vmatprep.subr.bf16.mxu0 %v1277
      %1478 = vmatpush1.bf16.msra.mxu0 %v1276
      %1479 = vmatprep.subr.bf16.mxu0 %v1279
      %1480 = vmatpush1.bf16.msra.mxu0 %v1278
      %1481 = vmatprep.subr.bf16.mxu0 %v1281
      %1482 = vmatpush1.bf16.msra.mxu0 %v1280
      %1483 = vmatprep.mubr.bf16.mxu0 %v878
      %1484 = vmatmul.mubr.bf16.gmra.mrb[0].mxu0 %v877
      %v1485 = vpop.f32.mrb[0].mxu0
      %v1486 = vadd.f32 %v1413, %v1485
      %v1487 = vpop.f32.mrb[0].mxu0
      %v1488 = vadd.f32 %v1415, %v1487
      %v1489 = vpop.f32.mrb[0].mxu0
      %v1490 = vadd.f32 %v1417, %v1489
      %v1491 = vpop.f32.mrb[0].mxu0
      %v1492 = vadd.f32 %v1419, %v1491
      %1493 = vmatprep.mubr.bf16.mxu0 %v880
      %1494 = vmatmul.mubr.bf16.gmra.mrb[0].mxu0 %v879
      %v1495 = vpop.f32.mrb[0].mxu0
      %v1496 = vadd.f32 %v1423, %v1495
      %v1497 = vpop.f32.mrb[0].mxu0
      %v1498 = vadd.f32 %v1425, %v1497
      %v1499 = vpop.f32.mrb[0].mxu0
      %v1500 = vadd.f32 %v1427, %v1499
      %v1501 = vpop.f32.mrb[0].mxu0
      %v1502 = vadd.f32 %v1429, %v1501
      %1503 = vmatprep.mubr.bf16.mxu0 %v882
      %1504 = vmatmul.mubr.bf16.gmra.mrb[0].mxu0 %v881
      %v1505 = vpop.f32.mrb[0].mxu0
      %v1506 = vadd.f32 %v1433, %v1505
      %v1507 = vpop.f32.mrb[0].mxu0
      %v1508 = vadd.f32 %v1435, %v1507
      %v1509 = vpop.f32.mrb[0].mxu0
      %v1510 = vadd.f32 %v1437, %v1509
      %v1511 = vpop.f32.mrb[0].mxu0
      %v1512 = vadd.f32 %v1439, %v1511
      %1513 = vmatprep.mubr.bf16.mxu0 %v884
      %1514 = vmatmul.mubr.bf16.gmra.mrb[0].mxu0 %v883
      %v1515 = vpop.f32.mrb[0].mxu0
      %v1516 = vadd.f32 %v1443, %v1515
      %v1517 = vpop.f32.mrb[0].mxu0
      %v1518 = vadd.f32 %v1445, %v1517
      %v1519 = vpop.f32.mrb[0].mxu0
      %v1520 = vadd.f32 %v1447, %v1519
      %v1521 = vpop.f32.mrb[0].mxu0
      %v1522 = vadd.f32 %v1449, %v1521
      %1523 = vdwg.mxu0
      %1524 = vmatprep.subr.bf16.mxu0 %v1283
      %1525 = vmatpush1.bf16.msra.mxu0 %v1282
      %1526 = vmatprep.subr.bf16.mxu0 %v1285
      %1527 = vmatpush1.bf16.msra.mxu0 %v1284
      %1528 = vmatprep.subr.bf16.mxu0 %v1287
      %1529 = vmatpush1.bf16.msra.mxu0 %v1286
      %1530 = vmatprep.subr.bf16.mxu0 %v1289
      %1531 = vmatpush1.bf16.msra.mxu0 %v1288
      %1532 = vmatprep.subr.bf16.mxu0 %v1291
      %1533 = vmatpush1.bf16.msra.mxu0 %v1290
      %1534 = vmatprep.subr.bf16.mxu0 %v1293
      %1535 = vmatpush1.bf16.msra.mxu0 %v1292
      %1536 = vmatprep.subr.bf16.mxu0 %v1295
      %1537 = vmatpush1.bf16.msra.mxu0 %v1294
      %1538 = vmatprep.subr.bf16.mxu0 %v1297
      %1539 = vmatpush1.bf16.msra.mxu0 %v1296
      %1540 = vmatprep.subr.bf16.mxu0 0
      %1541 = vmatpush1.bf16.msra.mxu0 0
      %1542 = vmatprep.subr.bf16.mxu0 0
      %1543 = vmatpush1.bf16.msra.mxu0 0
      %1544 = vmatprep.subr.bf16.mxu0 0
      %1545 = vmatpush1.bf16.msra.mxu0 0
      %1546 = vmatprep.subr.bf16.mxu0 0
      %1547 = vmatpush1.bf16.msra.mxu0 0
      %1548 = vmatprep.subr.bf16.mxu0 0
      %1549 = vmatpush1.bf16.msra.mxu0 0
      %1550 = vmatprep.subr.bf16.mxu0 0
      %1551 = vmatpush1.bf16.msra.mxu0 0
      %1552 = vmatprep.subr.bf16.mxu0 0
      %1553 = vmatpush1.bf16.msra.mxu0 0
      %1554 = vmatprep.subr.bf16.mxu0 0
      %1555 = vmatpush1.bf16.msra.mxu0 0
      %1556 = vmatprep.mubr.bf16.mxu0 0
      %1557 = vmatmul.mubr.bf16.gmra.mrb[0].mxu0 %v879
      %v1558 = vpop.f32.mrb[0].mxu0
      %v1559 = vadd.f32 %v1486, %v1558
      %v1560 = vpop.f32.mrb[0].mxu0
      %v1561 = vadd.f32 %v1488, %v1560
      %v1562 = vpop.f32.mrb[0].mxu0
      %v1563 = vadd.f32 %v1490, %v1562
      %v1564 = vpop.f32.mrb[0].mxu0
      %v1565 = vadd.f32 %v1492, %v1564
      %1566 = vmatprep.mubr.bf16.mxu0 0
      %1567 = vmatmul.mubr.bf16.gmra.mrb[0].mxu0 %v881
      %v1568 = vpop.f32.mrb[0].mxu0
      %v1569 = vadd.f32 %v1496, %v1568
      %v1570 = vpop.f32.mrb[0].mxu0
      %v1571 = vadd.f32 %v1498, %v1570
      %v1572 = vpop.f32.mrb[0].mxu0
      %v1573 = vadd.f32 %v1500, %v1572
      %v1574 = vpop.f32.mrb[0].mxu0
      %v1575 = vadd.f32 %v1502, %v1574
      %1576 = vmatprep.mubr.bf16.mxu0 0
      %1577 = vmatmul.mubr.bf16.gmra.mrb[0].mxu0 %v883
      %v1578 = vpop.f32.mrb[0].mxu0
      %v1579 = vadd.f32 %v1506, %v1578
      %v1580 = vpop.f32.mrb[0].mxu0
      %v1581 = vadd.f32 %v1508, %v1580
      %v1582 = vpop.f32.mrb[0].mxu0
      %v1583 = vadd.f32 %v1510, %v1582
      %v1584 = vpop.f32.mrb[0].mxu0
      %v1585 = vadd.f32 %v1512, %v1584
      %1586 = vmatprep.mubr.bf16.mxu0 0
      %1587 = vmatmul.mubr.bf16.gmra.mrb[0].mxu0 %v885
      %v1588 = vpop.f32.mrb[0].mxu0
      %v1589 = vadd.f32 %v1516, %v1588
      %v1590 = vpop.f32.mrb[0].mxu0
      %v1591 = vadd.f32 %v1518, %v1590
      %v1592 = vpop.f32.mrb[0].mxu0
      %v1593 = vadd.f32 %v1520, %v1592
      %v1594 = vpop.f32.mrb[0].mxu0
      %v1595 = vadd.f32 %v1522, %v1594
      %1596 = vdwg.mxu0
      %v1597 = vmax.f32 %v1559, 0.0
      %v1598 = vmax.f32 %v1561, 0.0
      %v1599 = vmax.f32 %v1563, 0.0
      %v1600 = vmax.f32 %v1565, 0.0
      %v1601 = vmax.f32 %v1569, 0.0
      %v1602 = vmax.f32 %v1571, 0.0
      %v1603 = vmax.f32 %v1573, 0.0
      %v1604 = vmax.f32 %v1575, 0.0
      %v1605 = vmax.f32 %v1579, 0.0
      %v1606 = vmax.f32 %v1581, 0.0
      %v1607 = vmax.f32 %v1583, 0.0
      %v1608 = vmax.f32 %v1585, 0.0
      %v1609 = vmax.f32 %v1589, 0.0
      %v1610 = vmax.f32 %v1591, 0.0
      %v1611 = vmax.f32 %v1593, 0.0
      %v1612 = vmax.f32 %v1595, 0.0
      %v1613 = vmax.f32 %v1597, %v1598
      %v1614 = vmax.f32 %v1599, %v1600
      %v1615 = vmax.f32 %v1601, %v1602
      %v1616 = vmax.f32 %v1603, %v1604
      %v1617 = vmax.f32 %v1605, %v1606
      %v1618 = vmax.f32 %v1607, %v1608
      %v1619 = vmax.f32 %v1609, %v1610
      %v1620 = vmax.f32 %v1611, %v1612
      %v1621 = vmax.f32 %v1613, %v1614
      %v1622 = vmax.f32 %v1615, %v1616
      %v1623 = vmax.f32 %v1617, %v1618
      %v1624 = vmax.f32 %v1619, %v1620
      %v1625 = vpack.c.bf16 %v1621, %v1621
      %v1626 = vpack.c.bf16 %v1622, %v1622
      %v1627 = vpack.c.bf16 %v1623, %v1623
      %v1628 = vpack.c.bf16 %v1624, %v1624
      %v1629 = vld [vmem:[%s5] sm:$0xf]
      %v1630 = vld [vmem:[%s5 + $0x4] sm:$0xf]
      %v1631 = vld [vmem:[%s5 + $0x8] sm:$0xf]
      %v1632 = vld [vmem:[%s5 + $0xc] sm:$0xf]
      %v1633 = vld [vmem:[%s5 + $0x10] sm:$0xf]
      %v1634 = vld [vmem:[%s5 + $0x14] sm:$0xf]
      %v1635 = vld [vmem:[%s5 + $0x18] sm:$0xf]
      %v1636 = vld [vmem:[%s5 + $0x1c] sm:$0xf]
      %v1637 = vld [vmem:[%s5 + $0x20] sm:$0xf]
      %v1638 = vld [vmem:[%s5 + $0x24] sm:$0xf]
      %v1639 = vld [vmem:[%s5 + $0x28] sm:$0xf]
      %v1640 = vld [vmem:[%s5 + $0x2c] sm:$0xf]
      %v1641 = vld [vmem:[%s5 + $0x30] sm:$0xf]
      %v1642 = vld [vmem:[%s5 + $0x34] sm:$0xf]
      %v1643 = vld [vmem:[%s5 + $0x38] sm:$0xf]
      %v1644 = vld [vmem:[%s5 + $0x3c] sm:$0xf]
      %v1645 = vld [vmem:[%s5 + $0x40] sm:$0xf]
      %v1646 = vld [vmem:[%s5 + $0x44] sm:$0xf]
      %v1647 = vld [vmem:[%s5 + $0x48] sm:$0xf]
      %v1648 = vld [vmem:[%s5 + $0x4c] sm:$0xf]
      %v1649 = vld [vmem:[%s5 + $0x50] sm:$0xf]
      %v1650 = vld [vmem:[%s5 + $0x54] sm:$0xf]
      %v1651 = vld [vmem:[%s5 + $0x58] sm:$0xf]
      %v1652 = vld [vmem:[%s5 + $0x5c] sm:$0xf]
      %v1653 = vld [vmem:[%s5 + $0x60] sm:$0xf]
      %v1654 = vld [vmem:[%s5 + $0x64] sm:$0xf]
      %v1655 = vld [vmem:[%s5 + $0x68] sm:$0xf]
      %v1656 = vld [vmem:[%s5 + $0x6c] sm:$0xf]
      %v1657 = vld [vmem:[%s5 + $0x70] sm:$0xf]
      %v1658 = vld [vmem:[%s5 + $0x74] sm:$0xf]
      %v1659 = vld [vmem:[%s5 + $0x78] sm:$0xf]
      %v1660 = vld [vmem:[%s5 + $0x7c] sm:$0xf]
      %v1661 = vld [vmem:[%s5 + $0x80] sm:$0xf]
      %v1662 = vld [vmem:[%s5 + $0x84] sm:$0xf]
      %v1663 = vld [vmem:[%s5 + $0x88] sm:$0xf]
      %v1664 = vld [vmem:[%s5 + $0x8c] sm:$0xf]
      %v1665 = vld [vmem:[%s5 + $0x90] sm:$0xf]
      %v1666 = vld [vmem:[%s5 + $0x94] sm:$0xf]
      %v1667 = vld [vmem:[%s5 + $0x98] sm:$0xf]
      %v1668 = vld [vmem:[%s5 + $0x9c] sm:$0xf]
      %v1669 = vld [vmem:[%s5 + $0xa0] sm:$0xf]
      %v1670 = vld [vmem:[%s5 + $0xa4] sm:$0xf]
      %v1671 = vld [vmem:[%s5 + $0xa8] sm:$0xf]
      %v1672 = vld [vmem:[%s5 + $0xac] sm:$0xf]
      %v1673 = vld [vmem:[%s5 + $0xb0] sm:$0xf]
      %v1674 = vld [vmem:[%s5 + $0xb4] sm:$0xf]
      %v1675 = vld [vmem:[%s5 + $0xb8] sm:$0xf]
      %v1676 = vld [vmem:[%s5 + $0xbc] sm:$0xf]
      %v1677 = vld [vmem:[%s5 + $0xc0] sm:$0xf]
      %v1678 = vld [vmem:[%s5 + $0xc4] sm:$0xf]
      %v1679 = vld [vmem:[%s5 + $0xc8] sm:$0xf]
      %v1680 = vld [vmem:[%s5 + $0xcc] sm:$0xf]
      %v1681 = vld [vmem:[%s5 + $0xd0] sm:$0xf]
      %v1682 = vld [vmem:[%s5 + $0xd4] sm:$0xf]
      %v1683 = vld [vmem:[%s5 + $0xd8] sm:$0xf]
      %v1684 = vld [vmem:[%s5 + $0xdc] sm:$0xf]
      %v1685 = vld [vmem:[%s5 + $0xe0] sm:$0xf]
      %v1686 = vld [vmem:[%s5 + $0xe4] sm:$0xf]
      %v1687 = vld [vmem:[%s5 + $0xe8] sm:$0xf]
      %v1688 = vld [vmem:[%s5 + $0xec] sm:$0xf]
      %v1689 = vld [vmem:[%s5 + $0xf0] sm:$0xf]
      %v1690 = vld [vmem:[%s5 + $0xf4] sm:$0xf]
      %v1691 = vld [vmem:[%s5 + $0xf8] sm:$0xf]
      %v1692 = vld [vmem:[%s5 + $0xfc] sm:$0xf]
      %v1693 = vld [vmem:[%s6] sm:$0x1]
      %v1695 = vlaneseq
      %v1696 = vshrl.u32 %v1695, 7
      %v1697 = vsub.s32 0, %v1696
      %v1698 = vrot.slane %v1693, %v1697
      %v1764 = vunpack.c.l.b16 %v1629
      %v1765 = vunpack.c.l.b16 %v1630
      %v1766 = vunpack.c.l.b16 %v1631
      %v1767 = vunpack.c.l.b16 %v1632
      %v1768 = vunpack.c.l.b16 %v1633
      %v1769 = vunpack.c.l.b16 %v1634
      %v1770 = vunpack.c.l.b16 %v1635
      %v1771 = vunpack.c.l.b16 %v1636
      %v1772 = vunpack.c.l.b16 %v1637
      %v1773 = vunpack.c.l.b16 %v1638
      %v1774 = vunpack.c.l.b16 %v1639
      %v1775 = vunpack.c.l.b16 %v1640
      %v1776 = vunpack.c.l.b16 %v1641
      %v1777 = vunpack.c.l.b16 %v1642
      %v1778 = vunpack.c.l.b16 %v1643
      %v1779 = vunpack.c.l.b16 %v1644
      %v1780 = vunpack.c.l.b16 %v1645
      %v1781 = vunpack.c.l.b16 %v1646
      %v1782 = vunpack.c.l.b16 %v1647
      %v1783 = vunpack.c.l.b16 %v1648
      %v1784 = vunpack.c.l.b16 %v1649
      %v1785 = vunpack.c.l.b16 %v1650
      %v1786 = vunpack.c.l.b16 %v1651
      %v1787 = vunpack.c.l.b16 %v1652
      %v1788 = vunpack.c.l.b16 %v1653
      %v1789 = vunpack.c.l.b16 %v1654
      %v1790 = vunpack.c.l.b16 %v1655
      %v1791 = vunpack.c.l.b16 %v1656
      %v1792 = vunpack.c.l.b16 %v1657
      %v1793 = vunpack.c.l.b16 %v1658
      %v1794 = vunpack.c.l.b16 %v1659
      %v1795 = vunpack.c.l.b16 %v1660
      %v1796 = vunpack.c.l.b16 %v1661
      %v1797 = vunpack.c.l.b16 %v1662
      %v1798 = vunpack.c.l.b16 %v1663
      %v1799 = vunpack.c.l.b16 %v1664
      %v1800 = vunpack.c.l.b16 %v1665
      %v1801 = vunpack.c.l.b16 %v1666
      %v1802 = vunpack.c.l.b16 %v1667
      %v1803 = vunpack.c.l.b16 %v1668
      %v1804 = vunpack.c.l.b16 %v1669
      %v1805 = vunpack.c.l.b16 %v1670
      %v1806 = vunpack.c.l.b16 %v1671
      %v1807 = vunpack.c.l.b16 %v1672
      %v1808 = vunpack.c.l.b16 %v1673
      %v1809 = vunpack.c.l.b16 %v1674
      %v1810 = vunpack.c.l.b16 %v1675
      %v1811 = vunpack.c.l.b16 %v1676
      %v1812 = vunpack.c.l.b16 %v1677
      %v1813 = vunpack.c.l.b16 %v1678
      %v1814 = vunpack.c.l.b16 %v1679
      %v1815 = vunpack.c.l.b16 %v1680
      %v1816 = vunpack.c.l.b16 %v1681
      %v1817 = vunpack.c.l.b16 %v1682
      %v1818 = vunpack.c.l.b16 %v1683
      %v1819 = vunpack.c.l.b16 %v1684
      %v1820 = vunpack.c.l.b16 %v1685
      %v1821 = vunpack.c.l.b16 %v1686
      %v1822 = vunpack.c.l.b16 %v1687
      %v1823 = vunpack.c.l.b16 %v1688
      %v1824 = vunpack.c.l.b16 %v1689
      %v1825 = vunpack.c.l.b16 %v1690
      %v1826 = vunpack.c.l.b16 %v1691
      %v1827 = vunpack.c.l.b16 %v1692
      %v1828 = vpack.c.b16 %v1765, %v1764
      %v1829 = vpack.c.b16 %v1767, %v1766
      %v1830 = vpack.c.b16 %v1769, %v1768
      %v1831 = vpack.c.b16 %v1771, %v1770
      %v1832 = vpack.c.b16 %v1773, %v1772
      %v1833 = vpack.c.b16 %v1775, %v1774
      %v1834 = vpack.c.b16 %v1777, %v1776
      %v1835 = vpack.c.b16 %v1779, %v1778
      %v1836 = vpack.c.b16 %v1781, %v1780
      %v1837 = vpack.c.b16 %v1783, %v1782
      %v1838 = vpack.c.b16 %v1785, %v1784
      %v1839 = vpack.c.b16 %v1787, %v1786
      %v1840 = vpack.c.b16 %v1789, %v1788
      %v1841 = vpack.c.b16 %v1791, %v1790
      %v1842 = vpack.c.b16 %v1793, %v1792
      %v1843 = vpack.c.b16 %v1795, %v1794
      %v1844 = vpack.c.b16 %v1797, %v1796
      %v1845 = vpack.c.b16 %v1799, %v1798
      %v1846 = vpack.c.b16 %v1801, %v1800
      %v1847 = vpack.c.b16 %v1803, %v1802
      %v1848 = vpack.c.b16 %v1805, %v1804
      %v1849 = vpack.c.b16 %v1807, %v1806
      %v1850 = vpack.c.b16 %v1809, %v1808
      %v1851 = vpack.c.b16 %v1811, %v1810
      %v1852 = vpack.c.b16 %v1813, %v1812
      %v1853 = vpack.c.b16 %v1815, %v1814
      %v1854 = vpack.c.b16 %v1817, %v1816
      %v1855 = vpack.c.b16 %v1819, %v1818
      %v1856 = vpack.c.b16 %v1821, %v1820
      %v1857 = vpack.c.b16 %v1823, %v1822
      %v1858 = vpack.c.b16 %v1825, %v1824
      %v1859 = vpack.c.b16 %v1827, %v1826
      %1892 = vmatprep.subr.bf16.mxu0 0
      %1893 = vmatpush1.bf16.msra.mxu0 %v1828
      %1894 = vmatprep.subr.bf16.mxu0 0
      %1895 = vmatpush1.bf16.msra.mxu0 %v1829
      %1896 = vmatprep.subr.bf16.mxu0 0
      %1897 = vmatpush1.bf16.msra.mxu0 %v1830
      %1898 = vmatprep.subr.bf16.mxu0 0
      %1899 = vmatpush1.bf16.msra.mxu0 %v1831
      %1900 = vmatprep.subr.bf16.mxu0 0
      %1901 = vmatpush1.bf16.msra.mxu0 %v1832
      %1902 = vmatprep.subr.bf16.mxu0 0
      %1903 = vmatpush1.bf16.msra.mxu0 %v1833
      %1904 = vmatprep.subr.bf16.mxu0 0
      %1905 = vmatpush1.bf16.msra.mxu0 %v1834
      %1906 = vmatprep.subr.bf16.mxu0 0
      %1907 = vmatpush1.bf16.msra.mxu0 %v1835
      %1908 = vmatprep.subr.bf16.mxu0 0
      %1909 = vmatpush1.bf16.msra.mxu0 %v1836
      %1910 = vmatprep.subr.bf16.mxu0 0
      %1911 = vmatpush1.bf16.msra.mxu0 %v1837
      %1912 = vmatprep.subr.bf16.mxu0 0
      %1913 = vmatpush1.bf16.msra.mxu0 %v1838
      %1914 = vmatprep.subr.bf16.mxu0 0
      %1915 = vmatpush1.bf16.msra.mxu0 %v1839
      %1916 = vmatprep.subr.bf16.mxu0 0
      %1917 = vmatpush1.bf16.msra.mxu0 %v1840
      %1918 = vmatprep.subr.bf16.mxu0 0
      %1919 = vmatpush1.bf16.msra.mxu0 %v1841
      %1920 = vmatprep.subr.bf16.mxu0 0
      %1921 = vmatpush1.bf16.msra.mxu0 %v1842
      %1922 = vmatprep.subr.bf16.mxu0 0
      %1923 = vmatpush1.bf16.msra.mxu0 %v1843
      %1924 = vmatprep.mubr.bf16.mxu0 %v1626
      %1925 = vmatmul.mubr.bf16.gmra.mrb[0].mxu0 %v1625
      %v1926 = vpop.f32.mrb[0].mxu0
      %v1927 = vadd.f32 %v1698, %v1926
      %v1928 = vpop.f32.mrb[0].mxu0
      %v1929 = vpop.f32.mrb[0].mxu0
      %v1930 = vpop.f32.mrb[0].mxu0
      %1931 = vdwg.mxu0
      %1932 = vmatprep.subr.bf16.mxu0 0
      %1933 = vmatpush1.bf16.msra.mxu0 %v1844
      %1934 = vmatprep.subr.bf16.mxu0 0
      %1935 = vmatpush1.bf16.msra.mxu0 %v1845
      %1936 = vmatprep.subr.bf16.mxu0 0
      %1937 = vmatpush1.bf16.msra.mxu0 %v1846
      %1938 = vmatprep.subr.bf16.mxu0 0
      %1939 = vmatpush1.bf16.msra.mxu0 %v1847
      %1940 = vmatprep.subr.bf16.mxu0 0
      %1941 = vmatpush1.bf16.msra.mxu0 %v1848
      %1942 = vmatprep.subr.bf16.mxu0 0
      %1943 = vmatpush1.bf16.msra.mxu0 %v1849
      %1944 = vmatprep.subr.bf16.mxu0 0
      %1945 = vmatpush1.bf16.msra.mxu0 %v1850
      %1946 = vmatprep.subr.bf16.mxu0 0
      %1947 = vmatpush1.bf16.msra.mxu0 %v1851
      %1948 = vmatprep.subr.bf16.mxu0 0
      %1949 = vmatpush1.bf16.msra.mxu0 %v1852
      %1950 = vmatprep.subr.bf16.mxu0 0
      %1951 = vmatpush1.bf16.msra.mxu0 %v1853
      %1952 = vmatprep.subr.bf16.mxu0 0
      %1953 = vmatpush1.bf16.msra.mxu0 %v1854
      %1954 = vmatprep.subr.bf16.mxu0 0
      %1955 = vmatpush1.bf16.msra.mxu0 %v1855
      %1956 = vmatprep.subr.bf16.mxu0 0
      %1957 = vmatpush1.bf16.msra.mxu0 %v1856
      %1958 = vmatprep.subr.bf16.mxu0 0
      %1959 = vmatpush1.bf16.msra.mxu0 %v1857
      %1960 = vmatprep.subr.bf16.mxu0 0
      %1961 = vmatpush1.bf16.msra.mxu0 %v1858
      %1962 = vmatprep.subr.bf16.mxu0 0
      %1963 = vmatpush1.bf16.msra.mxu0 %v1859
      %1964 = vmatprep.mubr.bf16.mxu0 %v1628
      %1965 = vmatmul.mubr.bf16.gmra.mrb[0].mxu0 %v1627
      %v1966 = vpop.f32.mrb[0].mxu0
      %v1967 = vadd.f32 %v1927, %v1966
      %v1968 = vpop.f32.mrb[0].mxu0
      %v1969 = vpop.f32.mrb[0].mxu0
      %v1970 = vpop.f32.mrb[0].mxu0
      %1971 = vdwg.mxu0
      %v1972 = vpack.c.bf16 %v1967, %v1967
      %v1973 = vld [vmem:[%s7] sm:$0xf]
      %v1974 = vld [vmem:[%s7 + $0x4] sm:$0xf]
      %v1975 = vld [vmem:[%s7 + $0x8] sm:$0xf]
      %v1976 = vld [vmem:[%s7 + $0xc] sm:$0xf]
      %v1977 = vld [vmem:[%s7 + $0x10] sm:$0xf]
      %v1978 = vld [vmem:[%s7 + $0x14] sm:$0xf]
      %v1979 = vld [vmem:[%s7 + $0x18] sm:$0xf]
      %v1980 = vld [vmem:[%s7 + $0x1c] sm:$0xf]
      %v1981 = vld [vmem:[%s7 + $0x20] sm:$0xf]
      %v1982 = vld [vmem:[%s7 + $0x24] sm:$0xf]
      %v1983 = vld [vmem:[%s7 + $0x28] sm:$0xf]
      %v1984 = vld [vmem:[%s7 + $0x2c] sm:$0xf]
      %v1985 = vld [vmem:[%s7 + $0x30] sm:$0xf]
      %v1986 = vld [vmem:[%s7 + $0x34] sm:$0xf]
      %v1987 = vld [vmem:[%s7 + $0x38] sm:$0xf]
      %v1988 = vld [vmem:[%s7 + $0x3c] sm:$0xf]
      %v1989 = vld [vmem:[%s8] sm:$0x1]
      %v1991 = vlaneseq
      %v1992 = vshrl.u32 %v1991, 7
      %v1993 = vsub.s32 0, %v1992
      %v1994 = vrot.slane %v1989, %v1993
      %v2012 = vunpack.c.l.b16 %v1973
      %v2013 = vunpack.c.l.b16 %v1974
      %v2014 = vunpack.c.l.b16 %v1975
      %v2015 = vunpack.c.l.b16 %v1976
      %v2016 = vunpack.c.l.b16 %v1977
      %v2017 = vunpack.c.l.b16 %v1978
      %v2018 = vunpack.c.l.b16 %v1979
      %v2019 = vunpack.c.l.b16 %v1980
      %v2020 = vunpack.c.l.b16 %v1981
      %v2021 = vunpack.c.l.b16 %v1982
      %v2022 = vunpack.c.l.b16 %v1983
      %v2023 = vunpack.c.l.b16 %v1984
      %v2024 = vunpack.c.l.b16 %v1985
      %v2025 = vunpack.c.l.b16 %v1986
      %v2026 = vunpack.c.l.b16 %v1987
      %v2027 = vunpack.c.l.b16 %v1988
      %v2028 = vpack.c.b16 %v2013, %v2012
      %v2029 = vpack.c.b16 %v2015, %v2014
      %v2030 = vpack.c.b16 %v2017, %v2016
      %v2031 = vpack.c.b16 %v2019, %v2018
      %v2032 = vpack.c.b16 %v2021, %v2020
      %v2033 = vpack.c.b16 %v2023, %v2022
      %v2034 = vpack.c.b16 %v2025, %v2024
      %v2035 = vpack.c.b16 %v2027, %v2026
      %2044 = vmatprep.subr.bf16.mxu0 0
      %2045 = vmatpush1.bf16.msra.mxu0 %v2028
      %2046 = vmatprep.subr.bf16.mxu0 0
      %2047 = vmatpush1.bf16.msra.mxu0 %v2029
      %2048 = vmatprep.subr.bf16.mxu0 0
      %2049 = vmatpush1.bf16.msra.mxu0 %v2030
      %2050 = vmatprep.subr.bf16.mxu0 0
      %2051 = vmatpush1.bf16.msra.mxu0 %v2031
      %2052 = vmatprep.subr.bf16.mxu0 0
      %2053 = vmatpush1.bf16.msra.mxu0 %v2032
      %2054 = vmatprep.subr.bf16.mxu0 0
      %2055 = vmatpush1.bf16.msra.mxu0 %v2033
      %2056 = vmatprep.subr.bf16.mxu0 0
      %2057 = vmatpush1.bf16.msra.mxu0 %v2034
      %2058 = vmatprep.subr.bf16.mxu0 0
      %2059 = vmatpush1.bf16.msra.mxu0 %v2035
      %2060 = vmatprep.subr.bf16.mxu0 0
      %2061 = vmatpush1.bf16.msra.mxu0 0
      %2062 = vmatprep.subr.bf16.mxu0 0
      %2063 = vmatpush1.bf16.msra.mxu0 0
      %2064 = vmatprep.subr.bf16.mxu0 0
      %2065 = vmatpush1.bf16.msra.mxu0 0
      %2066 = vmatprep.subr.bf16.mxu0 0
      %2067 = vmatpush1.bf16.msra.mxu0 0
      %2068 = vmatprep.subr.bf16.mxu0 0
      %2069 = vmatpush1.bf16.msra.mxu0 0
      %2070 = vmatprep.subr.bf16.mxu0 0
      %2071 = vmatpush1.bf16.msra.mxu0 0
      %2072 = vmatprep.subr.bf16.mxu0 0
      %2073 = vmatpush1.bf16.msra.mxu0 0
      %2074 = vmatprep.subr.bf16.mxu0 0
      %2075 = vmatpush1.bf16.msra.mxu0 0
      %2076 = vmatprep.mubr.bf16.mxu0 0
      %2077 = vmatmul.mubr.bf16.gmra.mrb[0].mxu0 %v1972
      %v2078 = vpop.f32.mrb[0].mxu0
      %v2079 = vadd.f32 %v1994, %v2078
      %v2080 = vpop.f32.mrb[0].mxu0
      %v2081 = vpop.f32.mrb[0].mxu0
      %v2082 = vpop.f32.mrb[0].mxu0
      %2083 = vdwg.mxu0
      %2084 = vst [vmem:[%s335] sm:$0xff] %v2079
      %p2085 = scmp.lt.s32.totalorder %s20, 3
      %s2086 = scalar_select %p2085, %s20, 3
      %s2087 = smul.addr %s2086, 8
      %s2088 = scalar_lea.vmem %s9, %s2087
      // Predicated region
      $region57: #{net_forward.1} parent=55 // pred_check
        %p2089 = pneg %p232
      $region58: #{net_forward.1} parent=55 // pred_check_branch
        %2091 = sbr.rel (%p2089) target = $region60
      $region59: #{net_forward.1} parent=55 // pred_region
        _
      $region60: #{net_forward.1} parent=55 // pred_fallthru
        _
    $region56: #{net_forward.1} parent=5 // pred_fallthru
      _
    %p2092 = scmp.le.s32.totalorder 2, %s15
    // Predicated region
    $region61: #{net_forward.1} parent=5 // pred_check
      %p2093 = pneg %p2092
    $region62: #{net_forward.1} parent=5 // pred_check_branch
      %2095 = sbr.rel (%p2093) target = $region64
    $region63: #{net_forward.1} parent=5 // pred_region
      %s2096 = ssub.s32 %s15, 2
      // Predicated region
      $region65: #{net_forward.1} parent=63 // pred_check
        %p2097 = pneg %p238
      $region66: #{net_forward.1} parent=63 // pred_check_branch
        %2099 = sbr.rel (%p2097) target = $region68
      $region67: #{net_forward.1} parent=63 // pred_region
        %p2100 = scmp.lt.s32.totalorder %s21, 3
        %s2101 = scalar_select %p2100, %s21, 3
        %s2102 = smul.addr %s2101, 8
        %s2103 = scalar_lea.vmem %s9, %s2102
      $region68: #{net_forward.1} parent=63 // pred_fallthru
        _
    $region64: #{net_forward.1} parent=5 // pred_fallthru
      _
  $region6: #{net_forward.1} parent=0 // loop_footer
    %s19 = sadd.s32 1, %s15
  $region7: #{net_forward.1} parent=0 // loop_footer_branch
    %14 = sbr.rel target = $region3
  $region8: #{net_forward.1} parent=0 // loop_exit
    _

</llo_original>
